<compile_context>
chip_gen: v7x
topology: tpu7x:2x2x1
jax: 0.10.0
libtpu: 0.0.40
codegen_flags: <defaults>
</compile_context>

<pallas_src>
import functools

import jax
import jax.numpy as jnp
from jax.experimental import pallas as pl
from jax.experimental.pallas import tpu as pltpu


# ---------------------------------------------------------------------------
# Helpers.
# ---------------------------------------------------------------------------
def _round_up(v, m):
    return ((v + m - 1) // m) * m


def _vmem_capacity_bytes():
    try:
        return int(pltpu.get_tpu_info().vmem_capacity_bytes)
    except Exception:
        # Conservative default (v7x has 64 MiB per TensorCore).
        return 64 << 20


def _per_batch_row_vmem(C, HW, itemsize, dense):
    """Padded VMEM bytes one batch row costs inside the fused kernel."""
    hw_pad = _round_up(HW, 128)
    # Pipelined in + out buffers (double-buffered -> 4 live block copies).
    io = (_round_up(C * HW, 128) if dense else C * hw_pad) * itemsize
    # In-kernel intermediates: the (C, HW) view and the scaled result, both
    # kept in the *input* dtype (pooled vectors / MLP temporaries negligible).
    tmp = 2 * C * hw_pad * itemsize
    return 4 * io + tmp


def _pick_bt(B, C, HW, itemsize, budget, dense, min_steps=4):
    """Batch-tile size for the fused kernel; 0 if even bt=1 does not fit."""
    sub = 8 if itemsize >= 4 else 16                 # sublane granularity
    per_row = _per_batch_row_vmem(C, HW, itemsize, dense)
    fit = budget // per_row                          # VMEM-limited rows
    if fit < 1:
        return 0
    # Keep the grid >= min_steps long when B allows (pipelining overlap and
    # both TensorCores on v7x).
    steps_cap = max(1, -(-B // min_steps))
    bt = max(1, min(B, fit, steps_cap))
    if dense and bt < B and bt % sub != 0:
        # Dense layout puts bt on the sublane axis of a 2-D block: keep it
        # 8/16-aligned (or take the whole batch) to respect the (8,128)
        # block-shape rule and avoid relayouts in the tiny MLP.
        if bt > sub:
            bt = (bt // sub) * sub
        elif sub <= min(B, fit):
            bt = sub
        elif B <= fit:
            bt = B
        else:
            return 0
    return bt


# ---------------------------------------------------------------------------
# Fused single-pass kernels (block = one batch tile, full C*HW).
# ---------------------------------------------------------------------------
def _channel_scale(x3, w1_ref, b1_ref, w2_ref, b2_ref):
    """Per-(batch, channel) sigmoid gate from avg/max pooling + shared MLP."""
    HW = x3.shape[-1]
    # f32 accumulation for the pooled vectors only; no f32 copy of the block.
    avg = jnp.sum(x3, axis=-1, dtype=jnp.float32) * (1.0 / HW)   # (bt, C)
    mx = jnp.max(x3, axis=-1).astype(jnp.float32)                # (bt, C)

    w1 = w1_ref[...].astype(jnp.float32)
    b1 = b1_ref[...].astype(jnp.float32)
    w2 = w2_ref[...].astype(jnp.float32)
    b2 = b2_ref[...].astype(jnp.float32)

    def mlp(p):
        h = jnp.maximum(jnp.dot(p, w1, preferred_element_type=jnp.float32) + b1, 0.0)
        return jnp.dot(h, w2, preferred_element_type=jnp.float32) + b2

    # MXU work here is negligible on every generation; two tiny dots are
    # simpler than the concat-and-split trick (which only added relayouts).
    return jax.nn.sigmoid(mlp(avg) + mlp(mx))                     # (bt, C) f32


def _fused_kernel_3d(x_ref, w1_ref, b1_ref, w2_ref, b2_ref, o_ref):
    x3 = x_ref[...]                                               # (bt, C, HW)
    scale = _channel_scale(x3, w1_ref, b1_ref, w2_ref, b2_ref)
    o_ref[...] = x3 * scale.astype(x3.dtype)[:, :, None]          # input dtype


def _fused_kernel_dense(x_ref, w1_ref, b1_ref, w2_ref, b2_ref, o_ref, *, C, HW):
    xd = x_ref[...]                                               # (bt, C*HW) lane-dense
    bt = xd.shape[0]
    # In-VMEM relayout to the (bt, C, HW) view for pooling; runs at VMEM
    # bandwidth, cheap compared with the strided HBM DMAs / masked stores a
    # (bt, C, HW) block with HW % 128 != 0 would have cost.
    x3 = xd.reshape(bt, C, HW)
    scale = _channel_scale(x3, w1_ref, b1_ref, w2_ref, b2_ref)
    o_ref[...] = (x3 * scale.astype(xd.dtype)[:, :, None]).reshape(bt, C * HW)


def _fused_call(x3, w1, b1, w2, b2, *, bt, dense, vmem_limit):
    B, C, HW = x3.shape
    Hd = w1.shape[1]
    itemsize = jnp.dtype(x3.dtype).itemsize
    grid = (pl.cdiv(B, bt),)

    cost = pl.CostEstimate(
        flops=int(8 * B * C * Hd + 3 * B * C * HW),
        transcendentals=int(B * C),
        bytes_accessed=int(2 * B * C * HW * itemsize
                           + (w1.size + b1.size + w2.size + b2.size)
                           * jnp.dtype(w1.dtype).itemsize),
    )
    params = pltpu.CompilerParams(
        dimension_semantics=("parallel",),
        vmem_limit_bytes=int(vmem_limit),
    )
    w_specs = [
        pl.BlockSpec((C, Hd), lambda i: (0, 0)),
        pl.BlockSpec((1, Hd), lambda i: (0, 0)),
        pl.BlockSpec((Hd, C), lambda i: (0, 0)),
        pl.BlockSpec((1, C), lambda i: (0, 0)),
    ]

    if dense:
        xin = x3.reshape(B, C * HW)                 # free for contiguous NCHW
        kernel = functools.partial(_fused_kernel_dense, C=C, HW=HW)
        x_spec = pl.BlockSpec((bt, C * HW), lambda i: (i, 0))
        out_spec = pl.BlockSpec((bt, C * HW), lambda i: (i, 0))
        out_shape = jax.ShapeDtypeStruct((B, C * HW), x3.dtype)
    else:
        xin = x3
        kernel = _fused_kernel_3d
        x_spec = pl.BlockSpec((bt, C, HW), lambda i: (i, 0, 0))
        out_spec = pl.BlockSpec((bt, C, HW), lambda i: (i, 0, 0))
        out_shape = jax.ShapeDtypeStruct((B, C, HW), x3.dtype)

    out = pl.pallas_call(
        kernel,
        out_shape=out_shape,
        grid_spec=pltpu.PrefetchScalarGridSpec(
            num_scalar_prefetch=0,
            grid=grid,
            in_specs=[x_spec] + w_specs,
            out_specs=out_spec,
        ),
        compiler_params=params,
        cost_estimate=cost,
        # NOTE: callers that donate x could add input_output_aliases={0: 0}
        # (each block is fully loaded before its stores are issued).  Left
        # off because the test below re-reads x for the reference.
    )(xin, w1, b1, w2, b2)
    return out.reshape(B, C, HW)


# ---------------------------------------------------------------------------
# Two-pass fallback for blocks that do not fit VMEM even at bt = 1:
#   pass 1: HW-tiled pooling with in-place accumulation,
#   (tiny MLP + sigmoid as plain XLA),
#   pass 2: HW-tiled scale-apply.
# ---------------------------------------------------------------------------
def _pool_kernel(x_ref, sum_ref, max_ref, *, HW, hw_t, needs_mask):
    k = pl.program_id(1)

    @pl.when(k == 0)
    def _():
        sum_ref[...] = jnp.zeros(sum_ref.shape, sum_ref.dtype)
        max_ref[...] = jnp.full(max_ref.shape, -jnp.inf, max_ref.dtype)

    x = x_ref[...]                                   # (1, C, hw_t)
    if needs_mask:
        col = k * hw_t + jax.lax.broadcasted_iota(jnp.int32, x.shape, 2)
        valid = col < HW
        xs = jnp.where(valid, x, jnp.zeros_like(x))
        xm = jnp.where(valid, x, jnp.full_like(x, -jnp.inf))
    else:
        xs = x
        xm = x
    sum_ref[...] += jnp.sum(xs, axis=2, dtype=jnp.float32)[:, None, :]
    max_ref[...] = jnp.maximum(
        max_ref[...], jnp.max(xm, axis=2).astype(jnp.float32)[:, None, :])


def _apply_kernel(x_ref, s_ref, o_ref):
    o_ref[...] = x_ref[...] * s_ref[...]             # (1,C,hw_t) * (1,C,1)


def _channel_attn_two_pass(x3, w1, b1, w2, b2, *, budget, vmem_limit):
    B, C, HW = x3.shape
    itemsize = jnp.dtype(x3.dtype).itemsize

    # Lane-dense spatial tile (multiple of 128) sized so double-buffered
    # in/out blocks stay within the budget.
    if HW <= 128:
        hw_t = HW
    else:
        per_col128 = 4 * C * 128 * itemsize
        hw_t = max(1, budget // max(1, per_col128)) * 128
        hw_t = int(max(128, min(hw_t, (HW // 128) * 128)))
    n_hw = pl.cdiv(HW, hw_t)
    needs_mask = (HW % hw_t) != 0

    pool = pl.pallas_call(
        functools.partial(_pool_kernel, HW=HW, hw_t=hw_t, needs_mask=needs_mask),
        out_shape=(jax.ShapeDtypeStruct((B, 1, C), jnp.float32),
                   jax.ShapeDtypeStruct((B, 1, C), jnp.float32)),
        grid_spec=pltpu.PrefetchScalarGridSpec(
            num_scalar_prefetch=0,
            grid=(B, n_hw),
            in_specs=[pl.BlockSpec((1, C, hw_t), lambda b, k: (b, 0, k))],
            out_specs=(pl.BlockSpec((1, 1, C), lambda b, k: (b, 0, 0)),
                       pl.BlockSpec((1, 1, C), lambda b, k: (b, 0, 0))),
        ),
        compiler_params=pltpu.CompilerParams(
            dimension_semantics=("parallel", "arbitrary"),
            vmem_limit_bytes=int(vmem_limit)),
    )
    x_sum, x_max = pool(x3)
    avg = x_sum[:, 0, :] * (1.0 / HW)                 # (B, C) f32
    mx = x_max[:, 0, :]

    # The MLP is tiny ((B, C) @ (C, C/16)); run it as plain XLA between passes.
    def mlp(p):
        h = jnp.maximum(p @ w1.astype(jnp.float32) + b1.astype(jnp.float32), 0.0)
        return h @ w2.astype(jnp.float32) + b2.astype(jnp.float32)

    scale = jax.nn.sigmoid(mlp(avg) + mlp(mx)).astype(x3.dtype)[:, :, None]  # (B,C,1)

    out = pl.pallas_call(
        _apply_kernel,
        out_shape=jax.ShapeDtypeStruct((B, C, HW), x3.dtype),
        grid_spec=pltpu.PrefetchScalarGridSpec(
            num_scalar_prefetch=0,
            grid=(B, n_hw),
            in_specs=[pl.BlockSpec((1, C, hw_t), lambda b, k: (b, 0, k)),
                      pl.BlockSpec((1, C, 1), lambda b, k: (b, 0, 0))],
            out_specs=pl.BlockSpec((1, C, hw_t), lambda b, k: (b, 0, k)),
        ),
        compiler_params=pltpu.CompilerParams(
            dimension_semantics=("parallel", "parallel"),
            vmem_limit_bytes=int(vmem_limit)),
    )(x3, scale)
    return out


# ---------------------------------------------------------------------------
# Public wrapper.
# ---------------------------------------------------------------------------
def channel_attn(x, w1, b1, w2, b2, *, block_budget_bytes=None):
    """x: (B, C, H, W); w1: (C, Hd); b1: (1, Hd); w2: (Hd, C); b2: (1, C)."""
    B, C, H, W = x.shape
    HW = H * W
    itemsize = jnp.dtype(x.dtype).itemsize

    vmem_cap = _vmem_capacity_bytes()
    vmem_limit = min((3 * vmem_cap) // 4, 100 << 20)   # 48 MiB on v7x, 96 MiB on v5e/v6e
    budget = (2 * vmem_limit) // 3 if block_budget_bytes is None else int(block_budget_bytes)

    x3 = x.reshape(B, C, HW)                           # free for contiguous NCHW

    # Prefer the lane-dense 2-D layout when HW is not a multiple of 128 (the
    # 3-D layout is already dense otherwise).
    prefer_dense = (HW % 128) != 0
    layouts = ("dense", "3d") if prefer_dense else ("3d",)
    for layout in layouts:
        dense = layout == "dense"
        bt = _pick_bt(B, C, HW, itemsize, budget, dense)
        if bt < 1:
            continue
        try:
            out = _fused_call(x3, w1, b1, w2, b2, bt=bt, dense=dense,
                              vmem_limit=vmem_limit)
            return out.reshape(B, C, H, W)
        except Exception:
            # The dense layout needs an in-kernel relayout (reshape); if the
            # Mosaic toolchain rejects it, retry with the 3-D blocked layout.
            if layout == layouts[-1]:
                raise
            continue

    # Neither fused layout fits VMEM at bt = 1 -> HW-tiled two-pass path.
    out = _channel_attn_two_pass(x3, w1, b1, w2, b2, budget=budget,
                                 vmem_limit=vmem_limit)
    return out.reshape(B, C, H, W)


def channel_attn_ref(x, w1, b1, w2, b2):
    """Pure-JAX reference mirroring the PyTorch forward."""
    avg = jnp.mean(x, axis=(2, 3))
    mx = jnp.max(x, axis=(2, 3))

    def mlp(p):
        h = jnp.maximum(p @ w1 + b1, 0.0)
        return h @ w2 + b2

    scale = jax.nn.sigmoid(mlp(avg) + mlp(mx))[:, :, None, None]
    return x * scale


if __name__ == "__main__":
    # gate_channels must be divisible by reduction_ratio=16 for a non-empty
    # hidden layer.
    B, C, H, W = 2, 32, 8, 8
    reduction_ratio = 16
    Hd = C // reduction_ratio  # = 2

    key = jax.random.PRNGKey(0)
    kx, kw1, kb1, kw2, kb2 = jax.random.split(key, 5)

    x = jax.random.normal(kx, (B, C, H, W), dtype=jnp.float32)
    # Linear(C, Hd) then Linear(Hd, C), stored already-transposed.
    w1 = jax.random.normal(kw1, (C, Hd), dtype=jnp.float32) * 0.1
    b1 = jax.random.normal(kb1, (1, Hd), dtype=jnp.float32) * 0.1
    w2 = jax.random.normal(kw2, (Hd, C), dtype=jnp.float32) * 0.1
    b2 = jax.random.normal(kb2, (1, C), dtype=jnp.float32) * 0.1

    # Main (fused, lane-dense) path.
    out = jax.block_until_ready(channel_attn(x, w1, b1, w2, b2))
    ref = channel_attn_ref(x, w1, b1, w2, b2)
    assert out.shape == x.shape
    assert jnp.allclose(out, ref, atol=1e-5, rtol=1e-5), (
        float(jnp.max(jnp.abs(out - ref))))

    # Also exercise the two-pass HW-tiled fallback (forced via a tiny budget)
    # with a spatial extent that needs masked accumulation (16*20 = 320).
    x2 = jax.random.normal(kx, (2, C, 16, 20), dtype=jnp.float32)
    out2 = jax.block_until_ready(
        channel_attn(x2, w1, b1, w2, b2, block_budget_bytes=64 * 1024))
    ref2 = channel_attn_ref(x2, w1, b1, w2, b2)
    assert jnp.allclose(out2, ref2, atol=1e-5, rtol=1e-5), (
        float(jnp.max(jnp.abs(out2 - ref2))))

    print("KERNEL_OK")
</pallas_src>

<mosaic_0001>
module attributes {stable_mosaic.version = 11 : i64} {
  func.func @_fused_kernel_dense(%arg0: i32, %arg1: memref<2x2048xf32, #tpu.memory_space<vmem>>, %arg2: memref<32x2xf32, #tpu.memory_space<vmem>>, %arg3: memref<1x2xf32, #tpu.memory_space<vmem>>, %arg4: memref<2x32xf32, #tpu.memory_space<vmem>>, %arg5: memref<1x32xf32, #tpu.memory_space<vmem>>, %arg6: memref<2x2048xf32, #tpu.memory_space<vmem>>) attributes {dimension_semantics = [#tpu.dimension_semantics<parallel>], iteration_bounds = array<i64: 1>, scalar_prefetch = 0 : i64, scratch_operands = 0 : i64, tpu.core_type = #tpu.core_type<tc>, window_params = [{transform_indices = @transform_0, window_bounds = array<i64: 2, 2048>}, {pipeline_mode = #tpu.pipeline_mode<synchronous>, transform_indices = @transform_1, window_bounds = array<i64: 32, 2>}, {pipeline_mode = #tpu.pipeline_mode<synchronous>, transform_indices = @transform_2, window_bounds = array<i64: 1, 2>}, {pipeline_mode = #tpu.pipeline_mode<synchronous>, transform_indices = @transform_3, window_bounds = array<i64: 2, 32>}, {pipeline_mode = #tpu.pipeline_mode<synchronous>, transform_indices = @transform_4, window_bounds = array<i64: 1, 32>}, {transform_indices = @transform_5, window_bounds = array<i64: 2, 2048>}]} {
    %c0 = arith.constant 0 : index
    %c0_0 = arith.constant 0 : index
    %0 = vector.load %arg1[%c0, %c0_0] : memref<2x2048xf32, #tpu.memory_space<vmem>>, vector<2x2048xf32>
    %1 = vector.shape_cast %0 : vector<2x2048xf32> to vector<2x32x64xf32>
    %cst = arith.constant dense<0.000000e+00> : vector<2x32xf32>
    %2 = vector.multi_reduction <add>, %1, %cst [2] : vector<2x32x64xf32> to vector<2x32xf32>
    %cst_1 = arith.constant 1.562500e-02 : f32
    %3 = vector.broadcast %cst_1 : f32 to vector<2x32xf32>
    %4 = arith.mulf %2, %3 : vector<2x32xf32>
    %cst_2 = arith.constant dense<0xFF800000> : vector<2x32xf32>
    %5 = vector.multi_reduction <maximumf>, %1, %cst_2 [2] : vector<2x32x64xf32> to vector<2x32xf32>
    %c0_3 = arith.constant 0 : index
    %c0_4 = arith.constant 0 : index
    %6 = vector.load %arg2[%c0_3, %c0_4] : memref<32x2xf32, #tpu.memory_space<vmem>>, vector<32x2xf32>
    %c0_5 = arith.constant 0 : index
    %c0_6 = arith.constant 0 : index
    %7 = vector.load %arg3[%c0_5, %c0_6] : memref<1x2xf32, #tpu.memory_space<vmem>>, vector<1x2xf32>
    %c0_7 = arith.constant 0 : index
    %c0_8 = arith.constant 0 : index
    %8 = vector.load %arg4[%c0_7, %c0_8] : memref<2x32xf32, #tpu.memory_space<vmem>>, vector<2x32xf32>
    %c0_9 = arith.constant 0 : index
    %c0_10 = arith.constant 0 : index
    %9 = vector.load %arg5[%c0_9, %c0_10] : memref<1x32xf32, #tpu.memory_space<vmem>>, vector<1x32xf32>
    %cst_11 = arith.constant dense<0.000000e+00> : vector<2x2xf32>
    %10 = tpu.matmul %4, %6, %cst_11 {dimension_numbers = #tpu.dot_dimension_numbers<[1], [0], [0], [1], [0, 0, 1, 1], [], []>} : vector<2x32xf32>, vector<32x2xf32>, vector<2x2xf32> -> vector<2x2xf32>
    %11 = vector.broadcast %7 : vector<1x2xf32> to vector<2x2xf32>
    %12 = arith.addf %10, %11 : vector<2x2xf32>
    %cst_12 = arith.constant 0.000000e+00 : f32
    %13 = vector.broadcast %cst_12 : f32 to vector<2x2xf32>
    %14 = arith.maximumf %12, %13 : vector<2x2xf32>
    %cst_13 = arith.constant dense<0.000000e+00> : vector<2x32xf32>
    %15 = tpu.matmul %14, %8, %cst_13 {dimension_numbers = #tpu.dot_dimension_numbers<[1], [0], [0], [1], [0, 0, 1, 1], [], []>} : vector<2x2xf32>, vector<2x32xf32>, vector<2x32xf32> -> vector<2x32xf32>
    %16 = vector.broadcast %9 : vector<1x32xf32> to vector<2x32xf32>
    %17 = arith.addf %15, %16 : vector<2x32xf32>
    %cst_14 = arith.constant dense<0.000000e+00> : vector<2x2xf32>
    %18 = tpu.matmul %5, %6, %cst_14 {dimension_numbers = #tpu.dot_dimension_numbers<[1], [0], [0], [1], [0, 0, 1, 1], [], []>} : vector<2x32xf32>, vector<32x2xf32>, vector<2x2xf32> -> vector<2x2xf32>
    %19 = vector.broadcast %7 : vector<1x2xf32> to vector<2x2xf32>
    %20 = arith.addf %18, %19 : vector<2x2xf32>
    %cst_15 = arith.constant 0.000000e+00 : f32
    %21 = vector.broadcast %cst_15 : f32 to vector<2x2xf32>
    %22 = arith.maximumf %20, %21 : vector<2x2xf32>
    %cst_16 = arith.constant dense<0.000000e+00> : vector<2x32xf32>
    %23 = tpu.matmul %22, %8, %cst_16 {dimension_numbers = #tpu.dot_dimension_numbers<[1], [0], [0], [1], [0, 0, 1, 1], [], []>} : vector<2x2xf32>, vector<2x32xf32>, vector<2x32xf32> -> vector<2x32xf32>
    %24 = vector.broadcast %9 : vector<1x32xf32> to vector<2x32xf32>
    %25 = arith.addf %23, %24 : vector<2x32xf32>
    %26 = arith.addf %17, %25 : vector<2x32xf32>
    %27 = arith.negf %26 : vector<2x32xf32>
    %28 = math.exp %27 : vector<2x32xf32>
    %cst_17 = arith.constant 1.000000e+00 : f32
    %29 = vector.broadcast %cst_17 : f32 to vector<2x32xf32>
    %30 = arith.addf %29, %28 : vector<2x32xf32>
    %31 = arith.divf %29, %30 : vector<2x32xf32>
    %32 = vector.shape_cast %31 : vector<2x32xf32> to vector<2x32x1xf32>
    %33 = vector.broadcast %32 : vector<2x32x1xf32> to vector<2x32x64xf32>
    %34 = arith.mulf %1, %33 : vector<2x32x64xf32>
    %35 = vector.shape_cast %34 : vector<2x32x64xf32> to vector<2x2048xf32>
    %c0_18 = arith.constant 0 : index
    %c0_19 = arith.constant 0 : index
    %36 = vector.load %arg6[%c0_18, %c0_19] : memref<2x2048xf32, #tpu.memory_space<vmem>>, vector<2x2048xf32>
    tpu.vector_store %arg6[%c0_18, %c0_19], %35 {strides = array<i32>} : memref<2x2048xf32, #tpu.memory_space<vmem>>, vector<2x2048xf32>,
    return
  }
  func.func @transform_0(%arg0: i32) -> (i32, i32) {
    %c0_i32 = arith.constant 0 : i32
    %c0_i32_0 = arith.constant 0 : i32
    return %arg0, %c0_i32 : i32, i32
  }
  func.func @transform_1(%arg0: i32) -> (i32, i32) {
    %c0_i32 = arith.constant 0 : i32
    %c0_i32_0 = arith.constant 0 : i32
    %c0_i32_1 = arith.constant 0 : i32
    return %c0_i32, %c0_i32_0 : i32, i32
  }
  func.func @transform_2(%arg0: i32) -> (i32, i32) {
    %c0_i32 = arith.constant 0 : i32
    %c0_i32_0 = arith.constant 0 : i32
    %c0_i32_1 = arith.constant 0 : i32
    return %c0_i32, %c0_i32_0 : i32, i32
  }
  func.func @transform_3(%arg0: i32) -> (i32, i32) {
    %c0_i32 = arith.constant 0 : i32
    %c0_i32_0 = arith.constant 0 : i32
    %c0_i32_1 = arith.constant 0 : i32
    return %c0_i32, %c0_i32_0 : i32, i32
  }
  func.func @transform_4(%arg0: i32) -> (i32, i32) {
    %c0_i32 = arith.constant 0 : i32
    %c0_i32_0 = arith.constant 0 : i32
    %c0_i32_1 = arith.constant 0 : i32
    return %c0_i32, %c0_i32_0 : i32, i32
  }
  func.func @transform_5(%arg0: i32) -> (i32, i32) {
    %c0_i32 = arith.constant 0 : i32
    %c0_i32_0 = arith.constant 0 : i32
    return %arg0, %c0_i32 : i32, i32
  }
}

module attributes {stable_mosaic.version = 11 : i64} {
  func.func @_fused_kernel_3d(%arg0: i32, %arg1: memref<1x32x64xf32, #tpu.memory_space<vmem>>, %arg2: memref<32x2xf32, #tpu.memory_space<vmem>>, %arg3: memref<1x2xf32, #tpu.memory_space<vmem>>, %arg4: memref<2x32xf32, #tpu.memory_space<vmem>>, %arg5: memref<1x32xf32, #tpu.memory_space<vmem>>, %arg6: memref<1x32x64xf32, #tpu.memory_space<vmem>>) attributes {dimension_semantics = [#tpu.dimension_semantics<parallel>], iteration_bounds = array<i64: 2>, scalar_prefetch = 0 : i64, scratch_operands = 0 : i64, tpu.core_type = #tpu.core_type<tc>, window_params = [{transform_indices = @transform_0, window_bounds = array<i64: 1, 32, 64>}, {pipeline_mode = #tpu.pipeline_mode<synchronous>, transform_indices = @transform_1, window_bounds = array<i64: 32, 2>}, {pipeline_mode = #tpu.pipeline_mode<synchronous>, transform_indices = @transform_2, window_bounds = array<i64: 1, 2>}, {pipeline_mode = #tpu.pipeline_mode<synchronous>, transform_indices = @transform_3, window_bounds = array<i64: 2, 32>}, {pipeline_mode = #tpu.pipeline_mode<synchronous>, transform_indices = @transform_4, window_bounds = array<i64: 1, 32>}, {transform_indices = @transform_5, window_bounds = array<i64: 1, 32, 64>}]} {
    %c0 = arith.constant 0 : index
    %c0_0 = arith.constant 0 : index
    %c0_1 = arith.constant 0 : index
    %0 = vector.load %arg1[%c0, %c0_0, %c0_1] : memref<1x32x64xf32, #tpu.memory_space<vmem>>, vector<1x32x64xf32>
    %cst = arith.constant dense<0.000000e+00> : vector<1x32xf32>
    %1 = vector.multi_reduction <add>, %0, %cst [2] : vector<1x32x64xf32> to vector<1x32xf32>
    %cst_2 = arith.constant 1.562500e-02 : f32
    %2 = vector.broadcast %cst_2 : f32 to vector<1x32xf32>
    %3 = arith.mulf %1, %2 : vector<1x32xf32>
    %cst_3 = arith.constant dense<0xFF800000> : vector<1x32xf32>
    %4 = vector.multi_reduction <maximumf>, %0, %cst_3 [2] : vector<1x32x64xf32> to vector<1x32xf32>
    %c0_4 = arith.constant 0 : index
    %c0_5 = arith.constant 0 : index
    %5 = vector.load %arg2[%c0_4, %c0_5] : memref<32x2xf32, #tpu.memory_space<vmem>>, vector<32x2xf32>
    %c0_6 = arith.constant 0 : index
    %c0_7 = arith.constant 0 : index
    %6 = vector.load %arg3[%c0_6, %c0_7] : memref<1x2xf32, #tpu.memory_space<vmem>>, vector<1x2xf32>
    %c0_8 = arith.constant 0 : index
    %c0_9 = arith.constant 0 : index
    %7 = vector.load %arg4[%c0_8, %c0_9] : memref<2x32xf32, #tpu.memory_space<vmem>>, vector<2x32xf32>
    %c0_10 = arith.constant 0 : index
    %c0_11 = arith.constant 0 : index
    %8 = vector.load %arg5[%c0_10, %c0_11] : memref<1x32xf32, #tpu.memory_space<vmem>>, vector<1x32xf32>
    %cst_12 = arith.constant dense<0.000000e+00> : vector<1x2xf32>
    %9 = tpu.matmul %3, %5, %cst_12 {dimension_numbers = #tpu.dot_dimension_numbers<[1], [0], [0], [1], [0, 0, 1, 1], [], []>} : vector<1x32xf32>, vector<32x2xf32>, vector<1x2xf32> -> vector<1x2xf32>
    %10 = arith.addf %9, %6 : vector<1x2xf32>
    %cst_13 = arith.constant 0.000000e+00 : f32
    %11 = vector.broadcast %cst_13 : f32 to vector<1x2xf32>
    %12 = arith.maximumf %10, %11 : vector<1x2xf32>
    %cst_14 = arith.constant dense<0.000000e+00> : vector<1x32xf32>
    %13 = tpu.matmul %12, %7, %cst_14 {dimension_numbers = #tpu.dot_dimension_numbers<[1], [0], [0], [1], [0, 0, 1, 1], [], []>} : vector<1x2xf32>, vector<2x32xf32>, vector<1x32xf32> -> vector<1x32xf32>
    %14 = arith.addf %13, %8 : vector<1x32xf32>
    %cst_15 = arith.constant dense<0.000000e+00> : vector<1x2xf32>
    %15 = tpu.matmul %4, %5, %cst_15 {dimension_numbers = #tpu.dot_dimension_numbers<[1], [0], [0], [1], [0, 0, 1, 1], [], []>} : vector<1x32xf32>, vector<32x2xf32>, vector<1x2xf32> -> vector<1x2xf32>
    %16 = arith.addf %15, %6 : vector<1x2xf32>
    %cst_16 = arith.constant 0.000000e+00 : f32
    %17 = vector.broadcast %cst_16 : f32 to vector<1x2xf32>
    %18 = arith.maximumf %16, %17 : vector<1x2xf32>
    %cst_17 = arith.constant dense<0.000000e+00> : vector<1x32xf32>
    %19 = tpu.matmul %18, %7, %cst_17 {dimension_numbers = #tpu.dot_dimension_numbers<[1], [0], [0], [1], [0, 0, 1, 1], [], []>} : vector<1x2xf32>, vector<2x32xf32>, vector<1x32xf32> -> vector<1x32xf32>
    %20 = arith.addf %19, %8 : vector<1x32xf32>
    %21 = arith.addf %14, %20 : vector<1x32xf32>
    %22 = arith.negf %21 : vector<1x32xf32>
    %23 = math.exp %22 : vector<1x32xf32>
    %cst_18 = arith.constant 1.000000e+00 : f32
    %24 = vector.broadcast %cst_18 : f32 to vector<1x32xf32>
    %25 = arith.addf %24, %23 : vector<1x32xf32>
    %26 = arith.divf %24, %25 : vector<1x32xf32>
    %27 = vector.shape_cast %26 : vector<1x32xf32> to vector<1x32x1xf32>
    %28 = vector.broadcast %27 : vector<1x32x1xf32> to vector<1x32x64xf32>
    %29 = arith.mulf %0, %28 : vector<1x32x64xf32>
    %c0_19 = arith.constant 0 : index
    %c0_20 = arith.constant 0 : index
    %c0_21 = arith.constant 0 : index
    %30 = vector.load %arg6[%c0_19, %c0_20, %c0_21] : memref<1x32x64xf32, #tpu.memory_space<vmem>>, vector<1x32x64xf32>
    tpu.vector_store %arg6[%c0_19, %c0_20, %c0_21], %29 {strides = array<i32>} : memref<1x32x64xf32, #tpu.memory_space<vmem>>, vector<1x32x64xf32>,
    return
  }
  func.func @transform_0(%arg0: i32) -> (i32, i32, i32) {
    %c0_i32 = arith.constant 0 : i32
    %c0_i32_0 = arith.constant 0 : i32
    %c0_i32_1 = arith.constant 0 : i32
    return %arg0, %c0_i32, %c0_i32_0 : i32, i32, i32
  }
  func.func @transform_1(%arg0: i32) -> (i32, i32) {
    %c0_i32 = arith.constant 0 : i32
    %c0_i32_0 = arith.constant 0 : i32
    %c0_i32_1 = arith.constant 0 : i32
    return %c0_i32, %c0_i32_0 : i32, i32
  }
  func.func @transform_2(%arg0: i32) -> (i32, i32) {
    %c0_i32 = arith.constant 0 : i32
    %c0_i32_0 = arith.constant 0 : i32
    %c0_i32_1 = arith.constant 0 : i32
    return %c0_i32, %c0_i32_0 : i32, i32
  }
  func.func @transform_3(%arg0: i32) -> (i32, i32) {
    %c0_i32 = arith.constant 0 : i32
    %c0_i32_0 = arith.constant 0 : i32
    %c0_i32_1 = arith.constant 0 : i32
    return %c0_i32, %c0_i32_0 : i32, i32
  }
  func.func @transform_4(%arg0: i32) -> (i32, i32) {
    %c0_i32 = arith.constant 0 : i32
    %c0_i32_0 = arith.constant 0 : i32
    %c0_i32_1 = arith.constant 0 : i32
    return %c0_i32, %c0_i32_0 : i32, i32
  }
  func.func @transform_5(%arg0: i32) -> (i32, i32, i32) {
    %c0_i32 = arith.constant 0 : i32
    %c0_i32_0 = arith.constant 0 : i32
    %c0_i32_1 = arith.constant 0 : i32
    return %arg0, %c0_i32, %c0_i32_0 : i32, i32, i32
  }
}

</mosaic_0001>

<llo_original>
// kernel: tpu_custom_call.1
$region0: #{tpu_custom_call.1}
  #allocation0 [shape = 'u32[]', space=smem, size = 0x4, offset = 0x4, fixed_abs, tag = 'smem constant byte address 0x4 - core index']
  #allocation1 [shape = 'u32[144,128]{1,0:T(1,128)}', space=vmem, size = 0x12000, scoped, tag = 'internal scratch']
  %s0 = inlined_call_operand.vmem [shape: f32[2,2048], index: 0, kind: input, shape index: {}]
  %s1 = inlined_call_operand.vmem [shape: f32[32,2], index: 1, kind: input, shape index: {}]
  %s2 = inlined_call_operand.vmem [shape: f32[1,2], index: 2, kind: input, shape index: {}]
  %s3 = inlined_call_operand.vmem [shape: f32[2,32], index: 3, kind: input, shape index: {}]
  %s4 = inlined_call_operand.vmem [shape: f32[1,32], index: 4, kind: input, shape index: {}]
  %s5 = inlined_call_operand.hbm [shape: f32[2,2048], index: 5, kind: output, shape index: {}]
  %s6 = sld [smem:[#allocation0]]
  $region30: #{tpu_custom_call.1} parent=0
    _
  %s8 = ssub.s32 1, %s6
  %s9 = scalar_select 0, %s8, %s6
  $region1: #{tpu_custom_call.1} parent=0
    #allocation2 [shape = 'u8[16384]{0}', space=vmem, size = 0x4000, scoped, tag = 'output window, operand 0, single buffered']
    #allocation3 [shape = 's32[1]{0}', space=sflag, size = 0x4, scoped, tag = 'scoped memory for tpu_custom_call.1']
    %10 = vsyncpa [#allocation3], 0
    // Predicated region
    $region2: #{tpu_custom_call.1} parent=1 // pred_check
      _
    $region3: #{tpu_custom_call.1} parent=1 // pred_check_branch
      %12 = sbr.rel (0) target = $region5
    $region4: #{tpu_custom_call.1} parent=1 // pred_region
      _
    $region5: #{tpu_custom_call.1} parent=1 // pred_fallthru
      _
    // Predicated region
    $region6: #{tpu_custom_call.1} parent=1 // pred_check
      _
    $region7: #{tpu_custom_call.1} parent=1 // pred_check_branch
      %14 = sbr.rel (0) target = $region9
    $region8: #{tpu_custom_call.1} parent=1 // pred_region
      _
    $region9: #{tpu_custom_call.1} parent=1 // pred_fallthru
      _
    // Predicated region
    $region10: #{tpu_custom_call.1} parent=1 // pred_check
      _
    $region11: #{tpu_custom_call.1} parent=1 // pred_check_branch
      %16 = sbr.rel (0) target = $region13
    $region12: #{tpu_custom_call.1} parent=1 // pred_region
      _
    $region13: #{tpu_custom_call.1} parent=1 // pred_fallthru
      _
    // Predicated region
    $region14: #{tpu_custom_call.1} parent=1 // pred_check
      _
    $region15: #{tpu_custom_call.1} parent=1 // pred_check_branch
      %18 = sbr.rel (0) target = $region17
    $region16: #{tpu_custom_call.1} parent=1 // pred_region
      _
    $region17: #{tpu_custom_call.1} parent=1 // pred_fallthru
      _
    // Predicated region
    $region18: #{tpu_custom_call.1} parent=1 // pred_check
      _
    $region19: #{tpu_custom_call.1} parent=1 // pred_check_branch
      %20 = sbr.rel (0) target = $region21
    $region20: #{tpu_custom_call.1} parent=1 // pred_region
      _
    $region21: #{tpu_custom_call.1} parent=1 // pred_fallthru
      _
    %v21 = vld [vmem:[%s0] sm:$0xff]
    %v22 = vld [vmem:[%s0 + $0x8] sm:$0xff]
    %v23 = vld [vmem:[%s0 + $0x10] sm:$0xff]
    %v24 = vld [vmem:[%s0 + $0x18] sm:$0xff]
    %v26 = vrot.slane %v21, 2
    %28 = vrot.lane.b32.xlu0 %v21, 64
    %v29 = vpop.permute.xlu0 %28
    %v30 = vrot.slane %v29, 2
    %v32 = vrot.slane %v21, 4
    %v34 = vrot.slane %v29, 4
    %v36 = vrot.slane %v21, 6
    %v38 = vrot.slane %v29, 6
    %v41 = vrot.slane %v22, 2
    %43 = vrot.lane.b32.xlu0 %v22, 64
    %v44 = vpop.permute.xlu0 %43
    %v45 = vrot.slane %v44, 2
    %v47 = vrot.slane %v22, 4
    %v49 = vrot.slane %v44, 4
    %v51 = vrot.slane %v22, 6
    %v53 = vrot.slane %v44, 6
    %v56 = vrot.slane %v23, 2
    %58 = vrot.lane.b32.xlu0 %v23, 64
    %v59 = vpop.permute.xlu0 %58
    %v60 = vrot.slane %v59, 2
    %v62 = vrot.slane %v23, 4
    %v64 = vrot.slane %v59, 4
    %v66 = vrot.slane %v23, 6
    %v68 = vrot.slane %v59, 6
    %v71 = vrot.slane %v24, 2
    %73 = vrot.lane.b32.xlu0 %v24, 64
    %v74 = vpop.permute.xlu0 %73
    %v75 = vrot.slane %v74, 2
    %v77 = vrot.slane %v24, 4
    %v79 = vrot.slane %v74, 4
    %v81 = vrot.slane %v24, 6
    %v83 = vrot.slane %v74, 6
    %v89 = vcombine.low %v21, %v29
    %v91 = vunpack.c.l.s4 1934713408
    %v92 = vunpack.c.0.s8 %v91
    %v93 = vlaneseq
    %v94 = vshrl.u32 %v93, 7
    %v95 = vsub.s32 %v92, %v94
    %v96 = vrot.slane %v89, %v95
    %v97 = vcombine.high %v96, 0.0
    %v98 = vcombine.low %v26, %v30
    %v100 = vunpack.c.l.s4 1934713408
    %v101 = vunpack.c.0.s8 %v100
    %v102 = vlaneseq
    %v103 = vshrl.u32 %v102, 7
    %v104 = vsub.s32 %v101, %v103
    %v105 = vrot.slane %v98, %v104
    %v106 = vcombine.high %v105, 0.0
    %v107 = vcombine.low %v32, %v34
    %v109 = vunpack.c.l.s4 1934713408
    %v110 = vunpack.c.0.s8 %v109
    %v111 = vlaneseq
    %v112 = vshrl.u32 %v111, 7
    %v113 = vsub.s32 %v110, %v112
    %v114 = vrot.slane %v107, %v113
    %v115 = vcombine.high %v114, 0.0
    %v116 = vcombine.low %v36, %v38
    %v118 = vunpack.c.l.s4 1934713408
    %v119 = vunpack.c.0.s8 %v118
    %v120 = vlaneseq
    %v121 = vshrl.u32 %v120, 7
    %v122 = vsub.s32 %v119, %v121
    %v123 = vrot.slane %v116, %v122
    %v124 = vcombine.high %v123, 0.0
    %v125 = vcombine.low %v22, %v44
    %v127 = vunpack.c.l.s4 1934713408
    %v128 = vunpack.c.0.s8 %v127
    %v129 = vlaneseq
    %v130 = vshrl.u32 %v129, 7
    %v131 = vsub.s32 %v128, %v130
    %v132 = vrot.slane %v125, %v131
    %v133 = vcombine.high %v132, 0.0
    %v134 = vcombine.low %v41, %v45
    %v136 = vunpack.c.l.s4 1934713408
    %v137 = vunpack.c.0.s8 %v136
    %v138 = vlaneseq
    %v139 = vshrl.u32 %v138, 7
    %v140 = vsub.s32 %v137, %v139
    %v141 = vrot.slane %v134, %v140
    %v142 = vcombine.high %v141, 0.0
    %v143 = vcombine.low %v47, %v49
    %v145 = vunpack.c.l.s4 1934713408
    %v146 = vunpack.c.0.s8 %v145
    %v147 = vlaneseq
    %v148 = vshrl.u32 %v147, 7
    %v149 = vsub.s32 %v146, %v148
    %v150 = vrot.slane %v143, %v149
    %v151 = vcombine.high %v150, 0.0
    %v152 = vcombine.low %v51, %v53
    %v154 = vunpack.c.l.s4 1934713408
    %v155 = vunpack.c.0.s8 %v154
    %v156 = vlaneseq
    %v157 = vshrl.u32 %v156, 7
    %v158 = vsub.s32 %v155, %v157
    %v159 = vrot.slane %v152, %v158
    %v160 = vcombine.high %v159, 0.0
    %v161 = vcombine.low %v23, %v59
    %v163 = vunpack.c.l.s4 1934713408
    %v164 = vunpack.c.0.s8 %v163
    %v165 = vlaneseq
    %v166 = vshrl.u32 %v165, 7
    %v167 = vsub.s32 %v164, %v166
    %v168 = vrot.slane %v161, %v167
    %v169 = vcombine.high %v168, 0.0
    %v170 = vcombine.low %v56, %v60
    %v172 = vunpack.c.l.s4 1934713408
    %v173 = vunpack.c.0.s8 %v172
    %v174 = vlaneseq
    %v175 = vshrl.u32 %v174, 7
    %v176 = vsub.s32 %v173, %v175
    %v177 = vrot.slane %v170, %v176
    %v178 = vcombine.high %v177, 0.0
    %v179 = vcombine.low %v62, %v64
    %v181 = vunpack.c.l.s4 1934713408
    %v182 = vunpack.c.0.s8 %v181
    %v183 = vlaneseq
    %v184 = vshrl.u32 %v183, 7
    %v185 = vsub.s32 %v182, %v184
    %v186 = vrot.slane %v179, %v185
    %v187 = vcombine.high %v186, 0.0
    %v188 = vcombine.low %v66, %v68
    %v190 = vunpack.c.l.s4 1934713408
    %v191 = vunpack.c.0.s8 %v190
    %v192 = vlaneseq
    %v193 = vshrl.u32 %v192, 7
    %v194 = vsub.s32 %v191, %v193
    %v195 = vrot.slane %v188, %v194
    %v196 = vcombine.high %v195, 0.0
    %v197 = vcombine.low %v24, %v74
    %v199 = vunpack.c.l.s4 1934713408
    %v200 = vunpack.c.0.s8 %v199
    %v201 = vlaneseq
    %v202 = vshrl.u32 %v201, 7
    %v203 = vsub.s32 %v200, %v202
    %v204 = vrot.slane %v197, %v203
    %v205 = vcombine.high %v204, 0.0
    %v206 = vcombine.low %v71, %v75
    %v208 = vunpack.c.l.s4 1934713408
    %v209 = vunpack.c.0.s8 %v208
    %v210 = vlaneseq
    %v211 = vshrl.u32 %v210, 7
    %v212 = vsub.s32 %v209, %v211
    %v213 = vrot.slane %v206, %v212
    %v214 = vcombine.high %v213, 0.0
    %v215 = vcombine.low %v77, %v79
    %v217 = vunpack.c.l.s4 1934713408
    %v218 = vunpack.c.0.s8 %v217
    %v219 = vlaneseq
    %v220 = vshrl.u32 %v219, 7
    %v221 = vsub.s32 %v218, %v220
    %v222 = vrot.slane %v215, %v221
    %v223 = vcombine.high %v222, 0.0
    %v224 = vcombine.low %v81, %v83
    %v226 = vunpack.c.l.s4 1934713408
    %v227 = vunpack.c.0.s8 %v226
    %v228 = vlaneseq
    %v229 = vshrl.u32 %v228, 7
    %v230 = vsub.s32 %v227, %v229
    %v231 = vrot.slane %v224, %v230
    %v232 = vcombine.high %v231, 0.0
    %v265 = vcombine.low %v96, %v105
    %v266 = vcombine.low %v114, %v123
    %v268 = vunpack.c.l.s4 1983009808
    %v269 = vunpack.c.0.s8 %v268
    %v270 = vlaneseq
    %v271 = vshrl.u32 %v270, 7
    %v272 = vsub.s32 %v269, %v271
    %v273 = vrot.slane %v265, %v272
    %v275 = vunpack.c.l.s4 1983009808
    %v276 = vunpack.c.0.s8 %v275
    %v277 = vlaneseq
    %v278 = vshrl.u32 %v277, 7
    %v279 = vsub.s32 %v276, %v278
    %v280 = vrot.slane %v266, %v279
    %v281 = vcombine.low %v273, %v280
    %v282 = vcombine.low %v132, %v141
    %v283 = vcombine.low %v150, %v159
    %v285 = vunpack.c.l.s4 1983009808
    %v286 = vunpack.c.0.s8 %v285
    %v287 = vlaneseq
    %v288 = vshrl.u32 %v287, 7
    %v289 = vsub.s32 %v286, %v288
    %v290 = vrot.slane %v282, %v289
    %v292 = vunpack.c.l.s4 1983009808
    %v293 = vunpack.c.0.s8 %v292
    %v294 = vlaneseq
    %v295 = vshrl.u32 %v294, 7
    %v296 = vsub.s32 %v293, %v295
    %v297 = vrot.slane %v283, %v296
    %v298 = vcombine.low %v290, %v297
    %v299 = vcombine.low %v168, %v177
    %v300 = vcombine.low %v186, %v195
    %v302 = vunpack.c.l.s4 1983009808
    %v303 = vunpack.c.0.s8 %v302
    %v304 = vlaneseq
    %v305 = vshrl.u32 %v304, 7
    %v306 = vsub.s32 %v303, %v305
    %v307 = vrot.slane %v299, %v306
    %v309 = vunpack.c.l.s4 1983009808
    %v310 = vunpack.c.0.s8 %v309
    %v311 = vlaneseq
    %v312 = vshrl.u32 %v311, 7
    %v313 = vsub.s32 %v310, %v312
    %v314 = vrot.slane %v300, %v313
    %v315 = vcombine.low %v307, %v314
    %v316 = vcombine.low %v204, %v213
    %v317 = vcombine.low %v222, %v231
    %v319 = vunpack.c.l.s4 1983009808
    %v320 = vunpack.c.0.s8 %v319
    %v321 = vlaneseq
    %v322 = vshrl.u32 %v321, 7
    %v323 = vsub.s32 %v320, %v322
    %v324 = vrot.slane %v316, %v323
    %v326 = vunpack.c.l.s4 1983009808
    %v327 = vunpack.c.0.s8 %v326
    %v328 = vlaneseq
    %v329 = vshrl.u32 %v328, 7
    %v330 = vsub.s32 %v327, %v329
    %v331 = vrot.slane %v317, %v330
    %v332 = vcombine.low %v324, %v331
    %v333 = vcombine.low %v97, %v106
    %v334 = vcombine.low %v115, %v124
    %v336 = vunpack.c.l.s4 1983009808
    %v337 = vunpack.c.0.s8 %v336
    %v338 = vlaneseq
    %v339 = vshrl.u32 %v338, 7
    %v340 = vsub.s32 %v337, %v339
    %v341 = vrot.slane %v333, %v340
    %v343 = vunpack.c.l.s4 1983009808
    %v344 = vunpack.c.0.s8 %v343
    %v345 = vlaneseq
    %v346 = vshrl.u32 %v345, 7
    %v347 = vsub.s32 %v344, %v346
    %v348 = vrot.slane %v334, %v347
    %v349 = vcombine.low %v341, %v348
    %v350 = vcombine.low %v133, %v142
    %v351 = vcombine.low %v151, %v160
    %v353 = vunpack.c.l.s4 1983009808
    %v354 = vunpack.c.0.s8 %v353
    %v355 = vlaneseq
    %v356 = vshrl.u32 %v355, 7
    %v357 = vsub.s32 %v354, %v356
    %v358 = vrot.slane %v350, %v357
    %v360 = vunpack.c.l.s4 1983009808
    %v361 = vunpack.c.0.s8 %v360
    %v362 = vlaneseq
    %v363 = vshrl.u32 %v362, 7
    %v364 = vsub.s32 %v361, %v363
    %v365 = vrot.slane %v351, %v364
    %v366 = vcombine.low %v358, %v365
    %v367 = vcombine.low %v169, %v178
    %v368 = vcombine.low %v187, %v196
    %v370 = vunpack.c.l.s4 1983009808
    %v371 = vunpack.c.0.s8 %v370
    %v372 = vlaneseq
    %v373 = vshrl.u32 %v372, 7
    %v374 = vsub.s32 %v371, %v373
    %v375 = vrot.slane %v367, %v374
    %v377 = vunpack.c.l.s4 1983009808
    %v378 = vunpack.c.0.s8 %v377
    %v379 = vlaneseq
    %v380 = vshrl.u32 %v379, 7
    %v381 = vsub.s32 %v378, %v380
    %v382 = vrot.slane %v368, %v381
    %v383 = vcombine.low %v375, %v382
    %v384 = vcombine.low %v205, %v214
    %v385 = vcombine.low %v223, %v232
    %v387 = vunpack.c.l.s4 1983009808
    %v388 = vunpack.c.0.s8 %v387
    %v389 = vlaneseq
    %v390 = vshrl.u32 %v389, 7
    %v391 = vsub.s32 %v388, %v390
    %v392 = vrot.slane %v384, %v391
    %v394 = vunpack.c.l.s4 1983009808
    %v395 = vunpack.c.0.s8 %v394
    %v396 = vlaneseq
    %v397 = vshrl.u32 %v396, 7
    %v398 = vsub.s32 %v395, %v397
    %v399 = vrot.slane %v385, %v398
    %v400 = vcombine.low %v392, %v399
    %vm409 = vcmask 523264
    %v410 = vsel %vm409, %v281, 0.0
    %411 = vadd.xlane.f32.xlu0 %v410
    %v412 = vpop.xlane.xlu0 %411
    %v413 = vsel %vm409, %v298, 0.0
    %414 = vadd.xlane.f32.xlu0 %v413
    %v415 = vpop.xlane.xlu0 %414
    %v416 = vsel %vm409, %v315, 0.0
    %417 = vadd.xlane.f32.xlu0 %v416
    %v418 = vpop.xlane.xlu0 %417
    %v419 = vsel %vm409, %v332, 0.0
    %420 = vadd.xlane.f32.xlu0 %v419
    %v421 = vpop.xlane.xlu0 %420
    %v422 = vsel %vm409, %v349, 0.0
    %423 = vadd.xlane.f32.xlu0 %v422
    %v424 = vpop.xlane.xlu0 %423
    %v425 = vsel %vm409, %v366, 0.0
    %426 = vadd.xlane.f32.xlu0 %v425
    %v427 = vpop.xlane.xlu0 %426
    %v428 = vsel %vm409, %v383, 0.0
    %429 = vadd.xlane.f32.xlu0 %v428
    %v430 = vpop.xlane.xlu0 %429
    %v431 = vsel %vm409, %v400, 0.0
    %432 = vadd.xlane.f32.xlu0 %v431
    %v433 = vpop.xlane.xlu0 %432
    %v434 = vmul.f32 %v412, 0.015625
    %v435 = vmul.f32 %v415, 0.015625
    %v436 = vmul.f32 %v418, 0.015625
    %v437 = vmul.f32 %v421, 0.015625
    %v438 = vmul.f32 %v424, 0.015625
    %v439 = vmul.f32 %v427, 0.015625
    %v440 = vmul.f32 %v430, 0.015625
    %v441 = vmul.f32 %v433, 0.015625
    %v442 = vsel %vm409, %v281, -inf
    %443 = vmax.xlane.f32.xlu0 %v442
    %v444 = vpop.xlane.xlu0 %443
    %v445 = vsel %vm409, %v298, -inf
    %446 = vmax.xlane.f32.xlu0 %v445
    %v447 = vpop.xlane.xlu0 %446
    %v448 = vsel %vm409, %v315, -inf
    %449 = vmax.xlane.f32.xlu0 %v448
    %v450 = vpop.xlane.xlu0 %449
    %v451 = vsel %vm409, %v332, -inf
    %452 = vmax.xlane.f32.xlu0 %v451
    %v453 = vpop.xlane.xlu0 %452
    %v454 = vsel %vm409, %v349, -inf
    %455 = vmax.xlane.f32.xlu0 %v454
    %v456 = vpop.xlane.xlu0 %455
    %v457 = vsel %vm409, %v366, -inf
    %458 = vmax.xlane.f32.xlu0 %v457
    %v459 = vpop.xlane.xlu0 %458
    %v460 = vsel %vm409, %v383, -inf
    %461 = vmax.xlane.f32.xlu0 %v460
    %v462 = vpop.xlane.xlu0 %461
    %v463 = vsel %vm409, %v400, -inf
    %464 = vmax.xlane.f32.xlu0 %v463
    %v465 = vpop.xlane.xlu0 %464
    %v466 = vld [vmem:[%s1] sm:$0xff]
    %v467 = vld [vmem:[%s1 + $0x8] sm:$0xff]
    %v468 = vld [vmem:[%s1 + $0x10] sm:$0xff]
    %v469 = vld [vmem:[%s1 + $0x18] sm:$0xff]
    %v470 = vld [vmem:[%s2] sm:$0x1]
    %v471 = vld [vmem:[%s3] sm:$0x3]
    %v472 = vld [vmem:[%s4] sm:$0x1]
    %v474 = vlaneseq
    %v475 = vshrl.u32 %v474, 7
    %v476 = vsub.s32 0, %v475
    %v477 = vrot.slane %v470, %v476
    %v487 = vlaneseq
    %v488 = vand.u32 %v487, 127
    %v489 = vlaneseq
    %v490 = vshrl.u32 %v489, 7
    %v491 = vsub.s32 %v488, %v490
    %v492 = vrot.slane %v434, %v491
    %v493 = vadd.s32 %v488, 4294967288
    %v494 = vlaneseq
    %v495 = vshrl.u32 %v494, 7
    %v496 = vsub.s32 %v493, %v495
    %v497 = vrot.slane %v435, %v496
    %vm498 = vcmask 130112
    %v499 = vsel %vm498, %v497, %v492
    %v500 = vadd.s32 %v488, 4294967280
    %v501 = vlaneseq
    %v502 = vshrl.u32 %v501, 7
    %v503 = vsub.s32 %v500, %v502
    %v504 = vrot.slane %v436, %v503
    %vm505 = vcmask 195712
    %v506 = vsel %vm505, %v504, %v499
    %v507 = vadd.s32 %v488, 4294967272
    %v508 = vlaneseq
    %v509 = vshrl.u32 %v508, 7
    %v510 = vsub.s32 %v507, %v509
    %v511 = vrot.slane %v437, %v510
    %vm512 = vcmask 261312
    %v513 = vsel %vm512, %v511, %v506
    %v514 = vlaneseq
    %v515 = vshrl.u32 %v514, 7
    %v516 = vsub.s32 %v488, %v515
    %v517 = vrot.slane %v438, %v516
    %v518 = vlaneseq
    %v519 = vshrl.u32 %v518, 7
    %v520 = vsub.s32 %v493, %v519
    %v521 = vrot.slane %v439, %v520
    %v522 = vsel %vm498, %v521, %v517
    %v523 = vlaneseq
    %v524 = vshrl.u32 %v523, 7
    %v525 = vsub.s32 %v500, %v524
    %v526 = vrot.slane %v440, %v525
    %v527 = vsel %vm505, %v526, %v522
    %v528 = vlaneseq
    %v529 = vshrl.u32 %v528, 7
    %v530 = vsub.s32 %v507, %v529
    %v531 = vrot.slane %v441, %v530
    %v532 = vsel %vm512, %v531, %v527
    %vm533 = vcmask 1041409
    %v534 = vsel %vm533, %v532, %v513
    %vm535 = vcmask 261120
    %v536 = vsel %vm535, %v534, 0
    %538 = vmatprep.subr.mxu0 0.0
    %539 = vmatpush1.msra.mxu0 %v466
    %540 = vmatprep.subr.mxu0 0.0
    %541 = vmatpush1.msra.mxu0 %v467
    %542 = vmatprep.subr.mxu0 0.0
    %543 = vmatpush1.msra.mxu0 %v468
    %544 = vmatprep.subr.mxu0 0.0
    %545 = vmatpush1.msra.mxu0 %v469
    %546 = vmatprep.subr.mxu0 0.0
    %547 = vmatpush1.msra.mxu0 0.0
    %548 = vmatprep.subr.mxu0 0.0
    %549 = vmatpush1.msra.mxu0 0.0
    %550 = vmatprep.subr.mxu0 0.0
    %551 = vmatpush1.msra.mxu0 0.0
    %552 = vmatprep.subr.mxu0 0.0
    %553 = vmatpush1.msra.mxu0 0.0
    %554 = vmatprep.subr.mxu0 0.0
    %555 = vmatpush1.msra.mxu0 0.0
    %556 = vmatprep.subr.mxu0 0.0
    %557 = vmatpush1.msra.mxu0 0.0
    %558 = vmatprep.subr.mxu0 0.0
    %559 = vmatpush1.msra.mxu0 0.0
    %560 = vmatprep.subr.mxu0 0.0
    %561 = vmatpush1.msra.mxu0 0.0
    %562 = vmatprep.subr.mxu0 0.0
    %563 = vmatpush1.msra.mxu0 0.0
    %564 = vmatprep.subr.mxu0 0.0
    %565 = vmatpush1.msra.mxu0 0.0
    %566 = vmatprep.subr.mxu0 0.0
    %567 = vmatpush1.msra.mxu0 0.0
    %568 = vmatprep.subr.mxu0 0.0
    %569 = vmatpush1.msra.mxu0 0.0
    %570 = vmatprep.subr.mxu0 0.0
    %571 = vmatpush1.msra.mxu0 0.0
    %572 = vmatprep.subr.mxu0 0.0
    %573 = vmatpush1.msra.mxu0 0.0
    %574 = vmatprep.subr.mxu0 0.0
    %575 = vmatpush1.msra.mxu0 0.0
    %576 = vmatprep.subr.mxu0 0.0
    %577 = vmatpush1.msra.mxu0 0.0
    %578 = vmatprep.subr.mxu0 0.0
    %579 = vmatpush1.msra.mxu0 0.0
    %580 = vmatprep.subr.mxu0 0.0
    %581 = vmatpush1.msra.mxu0 0.0
    %582 = vmatprep.subr.mxu0 0.0
    %583 = vmatpush1.msra.mxu0 0.0
    %584 = vmatprep.subr.mxu0 0.0
    %585 = vmatpush1.msra.mxu0 0.0
    %586 = vmatprep.subr.mxu0 0.0
    %587 = vmatpush1.msra.mxu0 0.0
    %588 = vmatprep.subr.mxu0 0.0
    %589 = vmatpush1.msra.mxu0 0.0
    %590 = vmatprep.subr.mxu0 0.0
    %591 = vmatpush1.msra.mxu0 0.0
    %592 = vmatprep.subr.mxu0 0.0
    %593 = vmatpush1.msra.mxu0 0.0
    %594 = vmatprep.subr.mxu0 0.0
    %595 = vmatpush1.msra.mxu0 0.0
    %596 = vmatprep.subr.mxu0 0.0
    %597 = vmatpush1.msra.mxu0 0.0
    %598 = vmatprep.subr.mxu0 0.0
    %599 = vmatpush1.msra.mxu0 0.0
    %600 = vmatprep.subr.mxu0 0.0
    %601 = vmatpush1.msra.mxu0 0.0
    %602 = vmatprep.mubr.f32.mxu0 0.0
    %603 = vmatmul.mubr.f32.gmra.mrb[0].mxu0 %v536
    %v604 = vpop.f32.mrb[0].mxu0
    %v605 = vadd.f32 %v477, %v604
    %v606 = vpop.f32.mrb[0].mxu0
    %607 = vdwg.mxu0
    %v608 = vmax.f32 %v605, 0.0
    %v610 = vlaneseq
    %v611 = vshrl.u32 %v610, 7
    %v612 = vsub.s32 0, %v611
    %v613 = vrot.slane %v472, %v612
    %vm615 = vcmask 15360
    %v617 = vsel %vm615, %v608, 0
    %vm619 = vcmask 1041408
    %v621 = vsel %vm619, %v471, 0
    %623 = vmatprep.subr.mxu0 0.0
    %624 = vmatpush1.msra.mxu0 %v621
    %625 = vmatprep.subr.mxu0 0.0
    %626 = vmatpush1.msra.mxu0 0.0
    %627 = vmatprep.subr.mxu0 0.0
    %628 = vmatpush1.msra.mxu0 0.0
    %629 = vmatprep.subr.mxu0 0.0
    %630 = vmatpush1.msra.mxu0 0.0
    %631 = vmatprep.subr.mxu0 0.0
    %632 = vmatpush1.msra.mxu0 0.0
    %633 = vmatprep.subr.mxu0 0.0
    %634 = vmatpush1.msra.mxu0 0.0
    %635 = vmatprep.subr.mxu0 0.0
    %636 = vmatpush1.msra.mxu0 0.0
    %637 = vmatprep.subr.mxu0 0.0
    %638 = vmatpush1.msra.mxu0 0.0
    %639 = vmatprep.subr.mxu0 0.0
    %640 = vmatpush1.msra.mxu0 0.0
    %641 = vmatprep.subr.mxu0 0.0
    %642 = vmatpush1.msra.mxu0 0.0
    %643 = vmatprep.subr.mxu0 0.0
    %644 = vmatpush1.msra.mxu0 0.0
    %645 = vmatprep.subr.mxu0 0.0
    %646 = vmatpush1.msra.mxu0 0.0
    %647 = vmatprep.subr.mxu0 0.0
    %648 = vmatpush1.msra.mxu0 0.0
    %649 = vmatprep.subr.mxu0 0.0
    %650 = vmatpush1.msra.mxu0 0.0
    %651 = vmatprep.subr.mxu0 0.0
    %652 = vmatpush1.msra.mxu0 0.0
    %653 = vmatprep.subr.mxu0 0.0
    %654 = vmatpush1.msra.mxu0 0.0
    %655 = vmatprep.subr.mxu0 0.0
    %656 = vmatpush1.msra.mxu0 0.0
    %657 = vmatprep.subr.mxu0 0.0
    %658 = vmatpush1.msra.mxu0 0.0
    %659 = vmatprep.subr.mxu0 0.0
    %660 = vmatpush1.msra.mxu0 0.0
    %661 = vmatprep.subr.mxu0 0.0
    %662 = vmatpush1.msra.mxu0 0.0
    %663 = vmatprep.subr.mxu0 0.0
    %664 = vmatpush1.msra.mxu0 0.0
    %665 = vmatprep.subr.mxu0 0.0
    %666 = vmatpush1.msra.mxu0 0.0
    %667 = vmatprep.subr.mxu0 0.0
    %668 = vmatpush1.msra.mxu0 0.0
    %669 = vmatprep.subr.mxu0 0.0
    %670 = vmatpush1.msra.mxu0 0.0
    %671 = vmatprep.subr.mxu0 0.0
    %672 = vmatpush1.msra.mxu0 0.0
    %673 = vmatprep.subr.mxu0 0.0
    %674 = vmatpush1.msra.mxu0 0.0
    %675 = vmatprep.subr.mxu0 0.0
    %676 = vmatpush1.msra.mxu0 0.0
    %677 = vmatprep.subr.mxu0 0.0
    %678 = vmatpush1.msra.mxu0 0.0
    %679 = vmatprep.subr.mxu0 0.0
    %680 = vmatpush1.msra.mxu0 0.0
    %681 = vmatprep.subr.mxu0 0.0
    %682 = vmatpush1.msra.mxu0 0.0
    %683 = vmatprep.subr.mxu0 0.0
    %684 = vmatpush1.msra.mxu0 0.0
    %685 = vmatprep.subr.mxu0 0.0
    %686 = vmatpush1.msra.mxu0 0.0
    %687 = vmatprep.mubr.f32.mxu0 0.0
    %688 = vmatmul.mubr.f32.gmra.mrb[0].mxu0 %v617
    %v689 = vpop.f32.mrb[0].mxu0
    %v690 = vadd.f32 %v613, %v689
    %v691 = vpop.f32.mrb[0].mxu0
    %692 = vdwg.mxu0
    %v701 = vlaneseq
    %v702 = vshrl.u32 %v701, 7
    %v703 = vsub.s32 %v488, %v702
    %v704 = vrot.slane %v444, %v703
    %v705 = vlaneseq
    %v706 = vshrl.u32 %v705, 7
    %v707 = vsub.s32 %v493, %v706
    %v708 = vrot.slane %v447, %v707
    %v709 = vsel %vm498, %v708, %v704
    %v710 = vlaneseq
    %v711 = vshrl.u32 %v710, 7
    %v712 = vsub.s32 %v500, %v711
    %v713 = vrot.slane %v450, %v712
    %v714 = vsel %vm505, %v713, %v709
    %v715 = vlaneseq
    %v716 = vshrl.u32 %v715, 7
    %v717 = vsub.s32 %v507, %v716
    %v718 = vrot.slane %v453, %v717
    %v719 = vsel %vm512, %v718, %v714
    %v720 = vlaneseq
    %v721 = vshrl.u32 %v720, 7
    %v722 = vsub.s32 %v488, %v721
    %v723 = vrot.slane %v456, %v722
    %v724 = vlaneseq
    %v725 = vshrl.u32 %v724, 7
    %v726 = vsub.s32 %v493, %v725
    %v727 = vrot.slane %v459, %v726
    %v728 = vsel %vm498, %v727, %v723
    %v729 = vlaneseq
    %v730 = vshrl.u32 %v729, 7
    %v731 = vsub.s32 %v500, %v730
    %v732 = vrot.slane %v462, %v731
    %v733 = vsel %vm505, %v732, %v728
    %v734 = vlaneseq
    %v735 = vshrl.u32 %v734, 7
    %v736 = vsub.s32 %v507, %v735
    %v737 = vrot.slane %v465, %v736
    %v738 = vsel %vm512, %v737, %v733
    %v739 = vsel %vm533, %v738, %v719
    %v740 = vsel %vm535, %v739, 0
    %742 = vmatprep.subr.mxu0 0.0
    %743 = vmatpush1.msra.mxu0 %v466
    %744 = vmatprep.subr.mxu0 0.0
    %745 = vmatpush1.msra.mxu0 %v467
    %746 = vmatprep.subr.mxu0 0.0
    %747 = vmatpush1.msra.mxu0 %v468
    %748 = vmatprep.subr.mxu0 0.0
    %749 = vmatpush1.msra.mxu0 %v469
    %750 = vmatprep.subr.mxu0 0.0
    %751 = vmatpush1.msra.mxu0 0.0
    %752 = vmatprep.subr.mxu0 0.0
    %753 = vmatpush1.msra.mxu0 0.0
    %754 = vmatprep.subr.mxu0 0.0
    %755 = vmatpush1.msra.mxu0 0.0
    %756 = vmatprep.subr.mxu0 0.0
    %757 = vmatpush1.msra.mxu0 0.0
    %758 = vmatprep.subr.mxu0 0.0
    %759 = vmatpush1.msra.mxu0 0.0
    %760 = vmatprep.subr.mxu0 0.0
    %761 = vmatpush1.msra.mxu0 0.0
    %762 = vmatprep.subr.mxu0 0.0
    %763 = vmatpush1.msra.mxu0 0.0
    %764 = vmatprep.subr.mxu0 0.0
    %765 = vmatpush1.msra.mxu0 0.0
    %766 = vmatprep.subr.mxu0 0.0
    %767 = vmatpush1.msra.mxu0 0.0
    %768 = vmatprep.subr.mxu0 0.0
    %769 = vmatpush1.msra.mxu0 0.0
    %770 = vmatprep.subr.mxu0 0.0
    %771 = vmatpush1.msra.mxu0 0.0
    %772 = vmatprep.subr.mxu0 0.0
    %773 = vmatpush1.msra.mxu0 0.0
    %774 = vmatprep.subr.mxu0 0.0
    %775 = vmatpush1.msra.mxu0 0.0
    %776 = vmatprep.subr.mxu0 0.0
    %777 = vmatpush1.msra.mxu0 0.0
    %778 = vmatprep.subr.mxu0 0.0
    %779 = vmatpush1.msra.mxu0 0.0
    %780 = vmatprep.subr.mxu0 0.0
    %781 = vmatpush1.msra.mxu0 0.0
    %782 = vmatprep.subr.mxu0 0.0
    %783 = vmatpush1.msra.mxu0 0.0
    %784 = vmatprep.subr.mxu0 0.0
    %785 = vmatpush1.msra.mxu0 0.0
    %786 = vmatprep.subr.mxu0 0.0
    %787 = vmatpush1.msra.mxu0 0.0
    %788 = vmatprep.subr.mxu0 0.0
    %789 = vmatpush1.msra.mxu0 0.0
    %790 = vmatprep.subr.mxu0 0.0
    %791 = vmatpush1.msra.mxu0 0.0
    %792 = vmatprep.subr.mxu0 0.0
    %793 = vmatpush1.msra.mxu0 0.0
    %794 = vmatprep.subr.mxu0 0.0
    %795 = vmatpush1.msra.mxu0 0.0
    %796 = vmatprep.subr.mxu0 0.0
    %797 = vmatpush1.msra.mxu0 0.0
    %798 = vmatprep.subr.mxu0 0.0
    %799 = vmatpush1.msra.mxu0 0.0
    %800 = vmatprep.subr.mxu0 0.0
    %801 = vmatpush1.msra.mxu0 0.0
    %802 = vmatprep.subr.mxu0 0.0
    %803 = vmatpush1.msra.mxu0 0.0
    %804 = vmatprep.subr.mxu0 0.0
    %805 = vmatpush1.msra.mxu0 0.0
    %806 = vmatprep.mubr.f32.mxu0 0.0
    %807 = vmatmul.mubr.f32.gmra.mrb[0].mxu0 %v740
    %v808 = vpop.f32.mrb[0].mxu0
    %v809 = vadd.f32 %v477, %v808
    %v810 = vpop.f32.mrb[0].mxu0
    %811 = vdwg.mxu0
    %v812 = vmax.f32 %v809, 0.0
    %v814 = vsel %vm615, %v812, 0
    %816 = vmatprep.subr.mxu0 0.0
    %817 = vmatpush1.msra.mxu0 %v621
    %818 = vmatprep.subr.mxu0 0.0
    %819 = vmatpush1.msra.mxu0 0.0
    %820 = vmatprep.subr.mxu0 0.0
    %821 = vmatpush1.msra.mxu0 0.0
    %822 = vmatprep.subr.mxu0 0.0
    %823 = vmatpush1.msra.mxu0 0.0
    %824 = vmatprep.subr.mxu0 0.0
    %825 = vmatpush1.msra.mxu0 0.0
    %826 = vmatprep.subr.mxu0 0.0
    %827 = vmatpush1.msra.mxu0 0.0
    %828 = vmatprep.subr.mxu0 0.0
    %829 = vmatpush1.msra.mxu0 0.0
    %830 = vmatprep.subr.mxu0 0.0
    %831 = vmatpush1.msra.mxu0 0.0
    %832 = vmatprep.subr.mxu0 0.0
    %833 = vmatpush1.msra.mxu0 0.0
    %834 = vmatprep.subr.mxu0 0.0
    %835 = vmatpush1.msra.mxu0 0.0
    %836 = vmatprep.subr.mxu0 0.0
    %837 = vmatpush1.msra.mxu0 0.0
    %838 = vmatprep.subr.mxu0 0.0
    %839 = vmatpush1.msra.mxu0 0.0
    %840 = vmatprep.subr.mxu0 0.0
    %841 = vmatpush1.msra.mxu0 0.0
    %842 = vmatprep.subr.mxu0 0.0
    %843 = vmatpush1.msra.mxu0 0.0
    %844 = vmatprep.subr.mxu0 0.0
    %845 = vmatpush1.msra.mxu0 0.0
    %846 = vmatprep.subr.mxu0 0.0
    %847 = vmatpush1.msra.mxu0 0.0
    %848 = vmatprep.subr.mxu0 0.0
    %849 = vmatpush1.msra.mxu0 0.0
    %850 = vmatprep.subr.mxu0 0.0
    %851 = vmatpush1.msra.mxu0 0.0
    %852 = vmatprep.subr.mxu0 0.0
    %853 = vmatpush1.msra.mxu0 0.0
    %854 = vmatprep.subr.mxu0 0.0
    %855 = vmatpush1.msra.mxu0 0.0
    %856 = vmatprep.subr.mxu0 0.0
    %857 = vmatpush1.msra.mxu0 0.0
    %858 = vmatprep.subr.mxu0 0.0
    %859 = vmatpush1.msra.mxu0 0.0
    %860 = vmatprep.subr.mxu0 0.0
    %861 = vmatpush1.msra.mxu0 0.0
    %862 = vmatprep.subr.mxu0 0.0
    %863 = vmatpush1.msra.mxu0 0.0
    %864 = vmatprep.subr.mxu0 0.0
    %865 = vmatpush1.msra.mxu0 0.0
    %866 = vmatprep.subr.mxu0 0.0
    %867 = vmatpush1.msra.mxu0 0.0
    %868 = vmatprep.subr.mxu0 0.0
    %869 = vmatpush1.msra.mxu0 0.0
    %870 = vmatprep.subr.mxu0 0.0
    %871 = vmatpush1.msra.mxu0 0.0
    %872 = vmatprep.subr.mxu0 0.0
    %873 = vmatpush1.msra.mxu0 0.0
    %874 = vmatprep.subr.mxu0 0.0
    %875 = vmatpush1.msra.mxu0 0.0
    %876 = vmatprep.subr.mxu0 0.0
    %877 = vmatpush1.msra.mxu0 0.0
    %878 = vmatprep.subr.mxu0 0.0
    %879 = vmatpush1.msra.mxu0 0.0
    %880 = vmatprep.mubr.f32.mxu0 0.0
    %881 = vmatmul.mubr.f32.gmra.mrb[0].mxu0 %v814
    %v882 = vpop.f32.mrb[0].mxu0
    %v883 = vadd.f32 %v613, %v882
    %v884 = vpop.f32.mrb[0].mxu0
    %885 = vdwg.mxu0
    %v886 = vadd.f32 %v690, %v883
    %v887 = vxor.u32 %v886, 2147483648
    %v888 = vmul.f32 %v887, 1.442695
    %v889 = vpow.pop %v888
    %v890 = vadd.f32 %v889, 1.0
    %v891 = vrcp.pop %v890
    %v892 = vmul.f32 1.0, %v891
    %v893 = vlaneseq
    %v894 = vshrl.u32 %v893, 7
    %v895 = vsub.s32 0, %v894
    %v896 = vrot.slane %v892, %v895
    %898 = vbcast.lane.b32.xlu0 %v896, 256
    %v899 = vpop.permute.xlu0 %898
    %s901 = sor.u32 256, 8
    %902 = vbcast.lane.b32.xlu0 %v896, %s901
    %v903 = vpop.permute.xlu0 %902
    %s905 = sor.u32 256, 16
    %906 = vbcast.lane.b32.xlu0 %v896, %s905
    %v907 = vpop.permute.xlu0 %906
    %s909 = sor.u32 256, 24
    %910 = vbcast.lane.b32.xlu0 %v896, %s909
    %v911 = vpop.permute.xlu0 %910
    %v912 = vlaneseq
    %v913 = vshrl.u32 %v912, 7
    %v914 = vsub.s32 1, %v913
    %v915 = vrot.slane %v892, %v914
    %917 = vbcast.lane.b32.xlu0 %v915, 256
    %v918 = vpop.permute.xlu0 %917
    %s920 = sor.u32 256, 8
    %921 = vbcast.lane.b32.xlu0 %v915, %s920
    %v922 = vpop.permute.xlu0 %921
    %s924 = sor.u32 256, 16
    %925 = vbcast.lane.b32.xlu0 %v915, %s924
    %v926 = vpop.permute.xlu0 %925
    %s928 = sor.u32 256, 24
    %929 = vbcast.lane.b32.xlu0 %v915, %s928
    %v930 = vpop.permute.xlu0 %929
    %v940 = vunpack.c.l.s4 269488144
    %v941 = vunpack.c.0.s8 %v940
    %v942 = vlaneseq
    %v943 = vshrl.u32 %v942, 7
    %v944 = vsub.s32 %v941, %v943
    %v945 = vrot.slane %v899, %v944
    %v947 = vunpack.c.l.s4 842150450
    %v948 = vunpack.c.0.s8 %v947
    %v949 = vlaneseq
    %v950 = vshrl.u32 %v949, 7
    %v951 = vsub.s32 %v948, %v950
    %v952 = vrot.slane %v899, %v951
    %v954 = vunpack.c.l.s4 1414812756
    %v955 = vunpack.c.0.s8 %v954
    %v956 = vlaneseq
    %v957 = vshrl.u32 %v956, 7
    %v958 = vsub.s32 %v955, %v957
    %v959 = vrot.slane %v899, %v958
    %v961 = vunpack.c.l.s4 1987475062
    %v962 = vunpack.c.0.s8 %v961
    %v963 = vlaneseq
    %v964 = vshrl.u32 %v963, 7
    %v965 = vsub.s32 %v962, %v964
    %v966 = vrot.slane %v899, %v965
    %v968 = vunpack.c.l.s4 269488144
    %v969 = vunpack.c.0.s8 %v968
    %v970 = vlaneseq
    %v971 = vshrl.u32 %v970, 7
    %v972 = vsub.s32 %v969, %v971
    %v973 = vrot.slane %v903, %v972
    %v975 = vunpack.c.l.s4 842150450
    %v976 = vunpack.c.0.s8 %v975
    %v977 = vlaneseq
    %v978 = vshrl.u32 %v977, 7
    %v979 = vsub.s32 %v976, %v978
    %v980 = vrot.slane %v903, %v979
    %v982 = vunpack.c.l.s4 1414812756
    %v983 = vunpack.c.0.s8 %v982
    %v984 = vlaneseq
    %v985 = vshrl.u32 %v984, 7
    %v986 = vsub.s32 %v983, %v985
    %v987 = vrot.slane %v903, %v986
    %v989 = vunpack.c.l.s4 1987475062
    %v990 = vunpack.c.0.s8 %v989
    %v991 = vlaneseq
    %v992 = vshrl.u32 %v991, 7
    %v993 = vsub.s32 %v990, %v992
    %v994 = vrot.slane %v903, %v993
    %v996 = vunpack.c.l.s4 269488144
    %v997 = vunpack.c.0.s8 %v996
    %v998 = vlaneseq
    %v999 = vshrl.u32 %v998, 7
    %v1000 = vsub.s32 %v997, %v999
    %v1001 = vrot.slane %v907, %v1000
    %v1003 = vunpack.c.l.s4 842150450
    %v1004 = vunpack.c.0.s8 %v1003
    %v1005 = vlaneseq
    %v1006 = vshrl.u32 %v1005, 7
    %v1007 = vsub.s32 %v1004, %v1006
    %v1008 = vrot.slane %v907, %v1007
    %v1010 = vunpack.c.l.s4 1414812756
    %v1011 = vunpack.c.0.s8 %v1010
    %v1012 = vlaneseq
    %v1013 = vshrl.u32 %v1012, 7
    %v1014 = vsub.s32 %v1011, %v1013
    %v1015 = vrot.slane %v907, %v1014
    %v1017 = vunpack.c.l.s4 1987475062
    %v1018 = vunpack.c.0.s8 %v1017
    %v1019 = vlaneseq
    %v1020 = vshrl.u32 %v1019, 7
    %v1021 = vsub.s32 %v1018, %v1020
    %v1022 = vrot.slane %v907, %v1021
    %v1024 = vunpack.c.l.s4 269488144
    %v1025 = vunpack.c.0.s8 %v1024
    %v1026 = vlaneseq
    %v1027 = vshrl.u32 %v1026, 7
    %v1028 = vsub.s32 %v1025, %v1027
    %v1029 = vrot.slane %v911, %v1028
    %v1031 = vunpack.c.l.s4 842150450
    %v1032 = vunpack.c.0.s8 %v1031
    %v1033 = vlaneseq
    %v1034 = vshrl.u32 %v1033, 7
    %v1035 = vsub.s32 %v1032, %v1034
    %v1036 = vrot.slane %v911, %v1035
    %v1038 = vunpack.c.l.s4 1414812756
    %v1039 = vunpack.c.0.s8 %v1038
    %v1040 = vlaneseq
    %v1041 = vshrl.u32 %v1040, 7
    %v1042 = vsub.s32 %v1039, %v1041
    %v1043 = vrot.slane %v911, %v1042
    %v1045 = vunpack.c.l.s4 1987475062
    %v1046 = vunpack.c.0.s8 %v1045
    %v1047 = vlaneseq
    %v1048 = vshrl.u32 %v1047, 7
    %v1049 = vsub.s32 %v1046, %v1048
    %v1050 = vrot.slane %v911, %v1049
    %v1052 = vunpack.c.l.s4 269488144
    %v1053 = vunpack.c.0.s8 %v1052
    %v1054 = vlaneseq
    %v1055 = vshrl.u32 %v1054, 7
    %v1056 = vsub.s32 %v1053, %v1055
    %v1057 = vrot.slane %v918, %v1056
    %v1059 = vunpack.c.l.s4 842150450
    %v1060 = vunpack.c.0.s8 %v1059
    %v1061 = vlaneseq
    %v1062 = vshrl.u32 %v1061, 7
    %v1063 = vsub.s32 %v1060, %v1062
    %v1064 = vrot.slane %v918, %v1063
    %v1066 = vunpack.c.l.s4 1414812756
    %v1067 = vunpack.c.0.s8 %v1066
    %v1068 = vlaneseq
    %v1069 = vshrl.u32 %v1068, 7
    %v1070 = vsub.s32 %v1067, %v1069
    %v1071 = vrot.slane %v918, %v1070
    %v1073 = vunpack.c.l.s4 1987475062
    %v1074 = vunpack.c.0.s8 %v1073
    %v1075 = vlaneseq
    %v1076 = vshrl.u32 %v1075, 7
    %v1077 = vsub.s32 %v1074, %v1076
    %v1078 = vrot.slane %v918, %v1077
    %v1080 = vunpack.c.l.s4 269488144
    %v1081 = vunpack.c.0.s8 %v1080
    %v1082 = vlaneseq
    %v1083 = vshrl.u32 %v1082, 7
    %v1084 = vsub.s32 %v1081, %v1083
    %v1085 = vrot.slane %v922, %v1084
    %v1087 = vunpack.c.l.s4 842150450
    %v1088 = vunpack.c.0.s8 %v1087
    %v1089 = vlaneseq
    %v1090 = vshrl.u32 %v1089, 7
    %v1091 = vsub.s32 %v1088, %v1090
    %v1092 = vrot.slane %v922, %v1091
    %v1094 = vunpack.c.l.s4 1414812756
    %v1095 = vunpack.c.0.s8 %v1094
    %v1096 = vlaneseq
    %v1097 = vshrl.u32 %v1096, 7
    %v1098 = vsub.s32 %v1095, %v1097
    %v1099 = vrot.slane %v922, %v1098
    %v1101 = vunpack.c.l.s4 1987475062
    %v1102 = vunpack.c.0.s8 %v1101
    %v1103 = vlaneseq
    %v1104 = vshrl.u32 %v1103, 7
    %v1105 = vsub.s32 %v1102, %v1104
    %v1106 = vrot.slane %v922, %v1105
    %v1108 = vunpack.c.l.s4 269488144
    %v1109 = vunpack.c.0.s8 %v1108
    %v1110 = vlaneseq
    %v1111 = vshrl.u32 %v1110, 7
    %v1112 = vsub.s32 %v1109, %v1111
    %v1113 = vrot.slane %v926, %v1112
    %v1115 = vunpack.c.l.s4 842150450
    %v1116 = vunpack.c.0.s8 %v1115
    %v1117 = vlaneseq
    %v1118 = vshrl.u32 %v1117, 7
    %v1119 = vsub.s32 %v1116, %v1118
    %v1120 = vrot.slane %v926, %v1119
    %v1122 = vunpack.c.l.s4 1414812756
    %v1123 = vunpack.c.0.s8 %v1122
    %v1124 = vlaneseq
    %v1125 = vshrl.u32 %v1124, 7
    %v1126 = vsub.s32 %v1123, %v1125
    %v1127 = vrot.slane %v926, %v1126
    %v1129 = vunpack.c.l.s4 1987475062
    %v1130 = vunpack.c.0.s8 %v1129
    %v1131 = vlaneseq
    %v1132 = vshrl.u32 %v1131, 7
    %v1133 = vsub.s32 %v1130, %v1132
    %v1134 = vrot.slane %v926, %v1133
    %v1136 = vunpack.c.l.s4 269488144
    %v1137 = vunpack.c.0.s8 %v1136
    %v1138 = vlaneseq
    %v1139 = vshrl.u32 %v1138, 7
    %v1140 = vsub.s32 %v1137, %v1139
    %v1141 = vrot.slane %v930, %v1140
    %v1143 = vunpack.c.l.s4 842150450
    %v1144 = vunpack.c.0.s8 %v1143
    %v1145 = vlaneseq
    %v1146 = vshrl.u32 %v1145, 7
    %v1147 = vsub.s32 %v1144, %v1146
    %v1148 = vrot.slane %v930, %v1147
    %v1150 = vunpack.c.l.s4 1414812756
    %v1151 = vunpack.c.0.s8 %v1150
    %v1152 = vlaneseq
    %v1153 = vshrl.u32 %v1152, 7
    %v1154 = vsub.s32 %v1151, %v1153
    %v1155 = vrot.slane %v930, %v1154
    %v1157 = vunpack.c.l.s4 1987475062
    %v1158 = vunpack.c.0.s8 %v1157
    %v1159 = vlaneseq
    %v1160 = vshrl.u32 %v1159, 7
    %v1161 = vsub.s32 %v1158, %v1160
    %v1162 = vrot.slane %v930, %v1161
    %v1195 = vmul.f32 %v96, %v945
    %v1196 = vmul.f32 %v105, %v952
    %v1197 = vmul.f32 %v114, %v959
    %v1198 = vmul.f32 %v123, %v966
    %v1199 = vmul.f32 %v132, %v973
    %v1200 = vmul.f32 %v141, %v980
    %v1201 = vmul.f32 %v150, %v987
    %v1202 = vmul.f32 %v159, %v994
    %v1203 = vmul.f32 %v168, %v1001
    %v1204 = vmul.f32 %v177, %v1008
    %v1205 = vmul.f32 %v186, %v1015
    %v1206 = vmul.f32 %v195, %v1022
    %v1207 = vmul.f32 %v204, %v1029
    %v1208 = vmul.f32 %v213, %v1036
    %v1209 = vmul.f32 %v222, %v1043
    %v1210 = vmul.f32 %v231, %v1050
    %v1211 = vmul.f32 %v97, %v1057
    %v1212 = vmul.f32 %v106, %v1064
    %v1213 = vmul.f32 %v115, %v1071
    %v1214 = vmul.f32 %v124, %v1078
    %v1215 = vmul.f32 %v133, %v1085
    %v1216 = vmul.f32 %v142, %v1092
    %v1217 = vmul.f32 %v151, %v1099
    %v1218 = vmul.f32 %v160, %v1106
    %v1219 = vmul.f32 %v169, %v1113
    %v1220 = vmul.f32 %v178, %v1120
    %v1221 = vmul.f32 %v187, %v1127
    %v1222 = vmul.f32 %v196, %v1134
    %v1223 = vmul.f32 %v205, %v1141
    %v1224 = vmul.f32 %v214, %v1148
    %v1225 = vmul.f32 %v223, %v1155
    %v1226 = vmul.f32 %v232, %v1162
    %v1227 = vcombine.low %v1195, %v1211
    %v1229 = vunpack.c.l.s4 1934713408
    %v1230 = vunpack.c.0.s8 %v1229
    %v1231 = vlaneseq
    %v1232 = vshrl.u32 %v1231, 7
    %v1233 = vsub.s32 %v1230, %v1232
    %v1234 = vrot.slane %v1227, %v1233
    %v1235 = vcombine.high %v1234, 0.0
    %v1236 = vcombine.low %v1196, %v1212
    %v1238 = vunpack.c.l.s4 1934713408
    %v1239 = vunpack.c.0.s8 %v1238
    %v1240 = vlaneseq
    %v1241 = vshrl.u32 %v1240, 7
    %v1242 = vsub.s32 %v1239, %v1241
    %v1243 = vrot.slane %v1236, %v1242
    %v1244 = vcombine.high %v1243, 0.0
    %v1245 = vcombine.low %v1197, %v1213
    %v1247 = vunpack.c.l.s4 1934713408
    %v1248 = vunpack.c.0.s8 %v1247
    %v1249 = vlaneseq
    %v1250 = vshrl.u32 %v1249, 7
    %v1251 = vsub.s32 %v1248, %v1250
    %v1252 = vrot.slane %v1245, %v1251
    %v1253 = vcombine.high %v1252, 0.0
    %v1254 = vcombine.low %v1198, %v1214
    %v1256 = vunpack.c.l.s4 1934713408
    %v1257 = vunpack.c.0.s8 %v1256
    %v1258 = vlaneseq
    %v1259 = vshrl.u32 %v1258, 7
    %v1260 = vsub.s32 %v1257, %v1259
    %v1261 = vrot.slane %v1254, %v1260
    %v1262 = vcombine.high %v1261, 0.0
    %v1263 = vcombine.low %v1199, %v1215
    %v1265 = vunpack.c.l.s4 1934713408
    %v1266 = vunpack.c.0.s8 %v1265
    %v1267 = vlaneseq
    %v1268 = vshrl.u32 %v1267, 7
    %v1269 = vsub.s32 %v1266, %v1268
    %v1270 = vrot.slane %v1263, %v1269
    %v1271 = vcombine.high %v1270, 0.0
    %v1272 = vcombine.low %v1200, %v1216
    %v1274 = vunpack.c.l.s4 1934713408
    %v1275 = vunpack.c.0.s8 %v1274
    %v1276 = vlaneseq
    %v1277 = vshrl.u32 %v1276, 7
    %v1278 = vsub.s32 %v1275, %v1277
    %v1279 = vrot.slane %v1272, %v1278
    %v1280 = vcombine.high %v1279, 0.0
    %v1281 = vcombine.low %v1201, %v1217
    %v1283 = vunpack.c.l.s4 1934713408
    %v1284 = vunpack.c.0.s8 %v1283
    %v1285 = vlaneseq
    %v1286 = vshrl.u32 %v1285, 7
    %v1287 = vsub.s32 %v1284, %v1286
    %v1288 = vrot.slane %v1281, %v1287
    %v1289 = vcombine.high %v1288, 0.0
    %v1290 = vcombine.low %v1202, %v1218
    %v1292 = vunpack.c.l.s4 1934713408
    %v1293 = vunpack.c.0.s8 %v1292
    %v1294 = vlaneseq
    %v1295 = vshrl.u32 %v1294, 7
    %v1296 = vsub.s32 %v1293, %v1295
    %v1297 = vrot.slane %v1290, %v1296
    %v1298 = vcombine.high %v1297, 0.0
    %v1299 = vcombine.low %v1203, %v1219
    %v1301 = vunpack.c.l.s4 1934713408
    %v1302 = vunpack.c.0.s8 %v1301
    %v1303 = vlaneseq
    %v1304 = vshrl.u32 %v1303, 7
    %v1305 = vsub.s32 %v1302, %v1304
    %v1306 = vrot.slane %v1299, %v1305
    %v1307 = vcombine.high %v1306, 0.0
    %v1308 = vcombine.low %v1204, %v1220
    %v1310 = vunpack.c.l.s4 1934713408
    %v1311 = vunpack.c.0.s8 %v1310
    %v1312 = vlaneseq
    %v1313 = vshrl.u32 %v1312, 7
    %v1314 = vsub.s32 %v1311, %v1313
    %v1315 = vrot.slane %v1308, %v1314
    %v1316 = vcombine.high %v1315, 0.0
    %v1317 = vcombine.low %v1205, %v1221
    %v1319 = vunpack.c.l.s4 1934713408
    %v1320 = vunpack.c.0.s8 %v1319
    %v1321 = vlaneseq
    %v1322 = vshrl.u32 %v1321, 7
    %v1323 = vsub.s32 %v1320, %v1322
    %v1324 = vrot.slane %v1317, %v1323
    %v1325 = vcombine.high %v1324, 0.0
    %v1326 = vcombine.low %v1206, %v1222
    %v1328 = vunpack.c.l.s4 1934713408
    %v1329 = vunpack.c.0.s8 %v1328
    %v1330 = vlaneseq
    %v1331 = vshrl.u32 %v1330, 7
    %v1332 = vsub.s32 %v1329, %v1331
    %v1333 = vrot.slane %v1326, %v1332
    %v1334 = vcombine.high %v1333, 0.0
    %v1335 = vcombine.low %v1207, %v1223
    %v1337 = vunpack.c.l.s4 1934713408
    %v1338 = vunpack.c.0.s8 %v1337
    %v1339 = vlaneseq
    %v1340 = vshrl.u32 %v1339, 7
    %v1341 = vsub.s32 %v1338, %v1340
    %v1342 = vrot.slane %v1335, %v1341
    %v1343 = vcombine.high %v1342, 0.0
    %v1344 = vcombine.low %v1208, %v1224
    %v1346 = vunpack.c.l.s4 1934713408
    %v1347 = vunpack.c.0.s8 %v1346
    %v1348 = vlaneseq
    %v1349 = vshrl.u32 %v1348, 7
    %v1350 = vsub.s32 %v1347, %v1349
    %v1351 = vrot.slane %v1344, %v1350
    %v1352 = vcombine.high %v1351, 0.0
    %v1353 = vcombine.low %v1209, %v1225
    %v1355 = vunpack.c.l.s4 1934713408
    %v1356 = vunpack.c.0.s8 %v1355
    %v1357 = vlaneseq
    %v1358 = vshrl.u32 %v1357, 7
    %v1359 = vsub.s32 %v1356, %v1358
    %v1360 = vrot.slane %v1353, %v1359
    %v1361 = vcombine.high %v1360, 0.0
    %v1362 = vcombine.low %v1210, %v1226
    %v1364 = vunpack.c.l.s4 1934713408
    %v1365 = vunpack.c.0.s8 %v1364
    %v1366 = vlaneseq
    %v1367 = vshrl.u32 %v1366, 7
    %v1368 = vsub.s32 %v1365, %v1367
    %v1369 = vrot.slane %v1362, %v1368
    %v1370 = vcombine.high %v1369, 0.0
    %v1373 = vunpack.c.l.s4 1983009808
    %v1374 = vunpack.c.0.s8 %v1373
    %v1375 = vlaneseq
    %v1376 = vshrl.u32 %v1375, 7
    %v1377 = vsub.s32 %v1374, %v1376
    %v1378 = vrot.slane %v1235, %v1377
    %1379 = vrot.lane.b32.xlu0 %v1378, 64
    %v1380 = vpop.permute.xlu0 %1379
    %v1384 = vunpack.c.l.s4 1983009808
    %v1385 = vunpack.c.0.s8 %v1384
    %v1386 = vlaneseq
    %v1387 = vshrl.u32 %v1386, 7
    %v1388 = vsub.s32 %v1385, %v1387
    %v1389 = vrot.slane %v1244, %v1388
    %1390 = vrot.lane.b32.xlu0 %v1389, 64
    %v1391 = vpop.permute.xlu0 %1390
    %v1395 = vunpack.c.l.s4 1983009808
    %v1396 = vunpack.c.0.s8 %v1395
    %v1397 = vlaneseq
    %v1398 = vshrl.u32 %v1397, 7
    %v1399 = vsub.s32 %v1396, %v1398
    %v1400 = vrot.slane %v1253, %v1399
    %1401 = vrot.lane.b32.xlu0 %v1400, 64
    %v1402 = vpop.permute.xlu0 %1401
    %v1406 = vunpack.c.l.s4 1983009808
    %v1407 = vunpack.c.0.s8 %v1406
    %v1408 = vlaneseq
    %v1409 = vshrl.u32 %v1408, 7
    %v1410 = vsub.s32 %v1407, %v1409
    %v1411 = vrot.slane %v1262, %v1410
    %1412 = vrot.lane.b32.xlu0 %v1411, 64
    %v1413 = vpop.permute.xlu0 %1412
    %v1417 = vunpack.c.l.s4 1983009808
    %v1418 = vunpack.c.0.s8 %v1417
    %v1419 = vlaneseq
    %v1420 = vshrl.u32 %v1419, 7
    %v1421 = vsub.s32 %v1418, %v1420
    %v1422 = vrot.slane %v1271, %v1421
    %1423 = vrot.lane.b32.xlu0 %v1422, 64
    %v1424 = vpop.permute.xlu0 %1423
    %v1428 = vunpack.c.l.s4 1983009808
    %v1429 = vunpack.c.0.s8 %v1428
    %v1430 = vlaneseq
    %v1431 = vshrl.u32 %v1430, 7
    %v1432 = vsub.s32 %v1429, %v1431
    %v1433 = vrot.slane %v1280, %v1432
    %1434 = vrot.lane.b32.xlu0 %v1433, 64
    %v1435 = vpop.permute.xlu0 %1434
    %v1439 = vunpack.c.l.s4 1983009808
    %v1440 = vunpack.c.0.s8 %v1439
    %v1441 = vlaneseq
    %v1442 = vshrl.u32 %v1441, 7
    %v1443 = vsub.s32 %v1440, %v1442
    %v1444 = vrot.slane %v1289, %v1443
    %1445 = vrot.lane.b32.xlu0 %v1444, 64
    %v1446 = vpop.permute.xlu0 %1445
    %v1450 = vunpack.c.l.s4 1983009808
    %v1451 = vunpack.c.0.s8 %v1450
    %v1452 = vlaneseq
    %v1453 = vshrl.u32 %v1452, 7
    %v1454 = vsub.s32 %v1451, %v1453
    %v1455 = vrot.slane %v1298, %v1454
    %1456 = vrot.lane.b32.xlu0 %v1455, 64
    %v1457 = vpop.permute.xlu0 %1456
    %v1461 = vunpack.c.l.s4 1983009808
    %v1462 = vunpack.c.0.s8 %v1461
    %v1463 = vlaneseq
    %v1464 = vshrl.u32 %v1463, 7
    %v1465 = vsub.s32 %v1462, %v1464
    %v1466 = vrot.slane %v1307, %v1465
    %1467 = vrot.lane.b32.xlu0 %v1466, 64
    %v1468 = vpop.permute.xlu0 %1467
    %v1472 = vunpack.c.l.s4 1983009808
    %v1473 = vunpack.c.0.s8 %v1472
    %v1474 = vlaneseq
    %v1475 = vshrl.u32 %v1474, 7
    %v1476 = vsub.s32 %v1473, %v1475
    %v1477 = vrot.slane %v1316, %v1476
    %1478 = vrot.lane.b32.xlu0 %v1477, 64
    %v1479 = vpop.permute.xlu0 %1478
    %v1483 = vunpack.c.l.s4 1983009808
    %v1484 = vunpack.c.0.s8 %v1483
    %v1485 = vlaneseq
    %v1486 = vshrl.u32 %v1485, 7
    %v1487 = vsub.s32 %v1484, %v1486
    %v1488 = vrot.slane %v1325, %v1487
    %1489 = vrot.lane.b32.xlu0 %v1488, 64
    %v1490 = vpop.permute.xlu0 %1489
    %v1494 = vunpack.c.l.s4 1983009808
    %v1495 = vunpack.c.0.s8 %v1494
    %v1496 = vlaneseq
    %v1497 = vshrl.u32 %v1496, 7
    %v1498 = vsub.s32 %v1495, %v1497
    %v1499 = vrot.slane %v1334, %v1498
    %1500 = vrot.lane.b32.xlu0 %v1499, 64
    %v1501 = vpop.permute.xlu0 %1500
    %v1505 = vunpack.c.l.s4 1983009808
    %v1506 = vunpack.c.0.s8 %v1505
    %v1507 = vlaneseq
    %v1508 = vshrl.u32 %v1507, 7
    %v1509 = vsub.s32 %v1506, %v1508
    %v1510 = vrot.slane %v1343, %v1509
    %1511 = vrot.lane.b32.xlu0 %v1510, 64
    %v1512 = vpop.permute.xlu0 %1511
    %v1516 = vunpack.c.l.s4 1983009808
    %v1517 = vunpack.c.0.s8 %v1516
    %v1518 = vlaneseq
    %v1519 = vshrl.u32 %v1518, 7
    %v1520 = vsub.s32 %v1517, %v1519
    %v1521 = vrot.slane %v1352, %v1520
    %1522 = vrot.lane.b32.xlu0 %v1521, 64
    %v1523 = vpop.permute.xlu0 %1522
    %v1527 = vunpack.c.l.s4 1983009808
    %v1528 = vunpack.c.0.s8 %v1527
    %v1529 = vlaneseq
    %v1530 = vshrl.u32 %v1529, 7
    %v1531 = vsub.s32 %v1528, %v1530
    %v1532 = vrot.slane %v1361, %v1531
    %1533 = vrot.lane.b32.xlu0 %v1532, 64
    %v1534 = vpop.permute.xlu0 %1533
    %v1538 = vunpack.c.l.s4 1983009808
    %v1539 = vunpack.c.0.s8 %v1538
    %v1540 = vlaneseq
    %v1541 = vshrl.u32 %v1540, 7
    %v1542 = vsub.s32 %v1539, %v1541
    %v1543 = vrot.slane %v1370, %v1542
    %1544 = vrot.lane.b32.xlu0 %v1543, 64
    %v1545 = vpop.permute.xlu0 %1544
    %v1547 = vsel %vm409, %v1234, %v1380
    %v1548 = vsel %vm409, %v1243, %v1391
    %v1549 = vsel %vm409, %v1252, %v1402
    %v1550 = vsel %vm409, %v1261, %v1413
    %v1551 = vsel %vm409, %v1270, %v1424
    %v1552 = vsel %vm409, %v1279, %v1435
    %v1553 = vsel %vm409, %v1288, %v1446
    %v1554 = vsel %vm409, %v1297, %v1457
    %v1555 = vsel %vm409, %v1306, %v1468
    %v1556 = vsel %vm409, %v1315, %v1479
    %v1557 = vsel %vm409, %v1324, %v1490
    %v1558 = vsel %vm409, %v1333, %v1501
    %v1559 = vsel %vm409, %v1342, %v1512
    %v1560 = vsel %vm409, %v1351, %v1523
    %v1561 = vsel %vm409, %v1360, %v1534
    %v1562 = vsel %vm409, %v1369, %v1545
    %v1579 = vcombine.low %v1547, %v1548
    %v1580 = vcombine.low %v1549, %v1550
    %v1582 = vunpack.c.l.s4 1983009808
    %v1583 = vunpack.c.0.s8 %v1582
    %v1584 = vlaneseq
    %v1585 = vshrl.u32 %v1584, 7
    %v1586 = vsub.s32 %v1583, %v1585
    %v1587 = vrot.slane %v1579, %v1586
    %v1589 = vunpack.c.l.s4 1983009808
    %v1590 = vunpack.c.0.s8 %v1589
    %v1591 = vlaneseq
    %v1592 = vshrl.u32 %v1591, 7
    %v1593 = vsub.s32 %v1590, %v1592
    %v1594 = vrot.slane %v1580, %v1593
    %v1595 = vcombine.low %v1587, %v1594
    %v1596 = vcombine.low %v1551, %v1552
    %v1597 = vcombine.low %v1553, %v1554
    %v1599 = vunpack.c.l.s4 1983009808
    %v1600 = vunpack.c.0.s8 %v1599
    %v1601 = vlaneseq
    %v1602 = vshrl.u32 %v1601, 7
    %v1603 = vsub.s32 %v1600, %v1602
    %v1604 = vrot.slane %v1596, %v1603
    %v1606 = vunpack.c.l.s4 1983009808
    %v1607 = vunpack.c.0.s8 %v1606
    %v1608 = vlaneseq
    %v1609 = vshrl.u32 %v1608, 7
    %v1610 = vsub.s32 %v1607, %v1609
    %v1611 = vrot.slane %v1597, %v1610
    %v1612 = vcombine.low %v1604, %v1611
    %v1613 = vcombine.low %v1555, %v1556
    %v1614 = vcombine.low %v1557, %v1558
    %v1616 = vunpack.c.l.s4 1983009808
    %v1617 = vunpack.c.0.s8 %v1616
    %v1618 = vlaneseq
    %v1619 = vshrl.u32 %v1618, 7
    %v1620 = vsub.s32 %v1617, %v1619
    %v1621 = vrot.slane %v1613, %v1620
    %v1623 = vunpack.c.l.s4 1983009808
    %v1624 = vunpack.c.0.s8 %v1623
    %v1625 = vlaneseq
    %v1626 = vshrl.u32 %v1625, 7
    %v1627 = vsub.s32 %v1624, %v1626
    %v1628 = vrot.slane %v1614, %v1627
    %v1629 = vcombine.low %v1621, %v1628
    %v1630 = vcombine.low %v1559, %v1560
    %v1631 = vcombine.low %v1561, %v1562
    %v1633 = vunpack.c.l.s4 1983009808
    %v1634 = vunpack.c.0.s8 %v1633
    %v1635 = vlaneseq
    %v1636 = vshrl.u32 %v1635, 7
    %v1637 = vsub.s32 %v1634, %v1636
    %v1638 = vrot.slane %v1630, %v1637
    %v1640 = vunpack.c.l.s4 1983009808
    %v1641 = vunpack.c.0.s8 %v1640
    %v1642 = vlaneseq
    %v1643 = vshrl.u32 %v1642, 7
    %v1644 = vsub.s32 %v1641, %v1643
    %v1645 = vrot.slane %v1631, %v1644
    %v1646 = vcombine.low %v1638, %v1645
    %1651 = vst [vmem:[#allocation2] sm:$0xff] %v1595
    %1652 = vst [vmem:[#allocation2 + $0x8] sm:$0xff] %v1612
    %1653 = vst [vmem:[#allocation2 + $0x10] sm:$0xff] %v1629
    %1654 = vst [vmem:[#allocation2 + $0x18] sm:$0xff] %v1646
    // Predicated region
    $region22: #{tpu_custom_call.1} parent=1 // pred_check
      _
    $region23: #{tpu_custom_call.1} parent=1 // pred_check_branch
      %1656 = sbr.rel (0) target = $region25
    $region24: #{tpu_custom_call.1} parent=1 // pred_region
      %s1658 = ssub.s32 512, 512
      %1659 = vsyncadd [#allocation3], %s1658
      %s1661 = sshll.u32 [#allocation2], 4
      %s1662 = int_to_ptr.vmem [resolvable:$true] %s1661
      %1664 = dma.vmem_to_hbm [thread:$0]  %s1662, 512, %s5, [#allocation3]
    $region25: #{tpu_custom_call.1} parent=1 // pred_fallthru
      _
    // Predicated region
    $region26: #{tpu_custom_call.1} parent=1 // pred_check
      _
    $region27: #{tpu_custom_call.1} parent=1 // pred_check_branch
      %1666 = sbr.rel (0) target = $region29
    $region28: #{tpu_custom_call.1} parent=1 // pred_region
      %1667 = dma.done [#allocation3], 512
    $region29: #{tpu_custom_call.1} parent=1 // pred_fallthru
      _
    %1668 = vsyncpa [#allocation3], 1

// kernel: tpu_custom_call.1
$region0: #{tpu_custom_call.1}
  #allocation0 [shape = 'u32[]', space=smem, size = 0x4, offset = 0x4, fixed_abs, tag = 'smem constant byte address 0x4 - core index']
  #allocation1 [shape = 'u32[144,128]{1,0:T(1,128)}', space=vmem, size = 0x12000, scoped, tag = 'internal scratch']
  %s0 = inlined_call_operand.hbm [shape: f32[2,32,64], index: 0, kind: input, shape index: {}]
  %s1 = inlined_call_operand.vmem [shape: f32[32,2], index: 1, kind: input, shape index: {}]
  %s2 = inlined_call_operand.vmem [shape: f32[1,2], index: 2, kind: input, shape index: {}]
  %s3 = inlined_call_operand.vmem [shape: f32[2,32], index: 3, kind: input, shape index: {}]
  %s4 = inlined_call_operand.vmem [shape: f32[1,32], index: 4, kind: input, shape index: {}]
  %s5 = inlined_call_operand.hbm [shape: f32[2,32,64], index: 5, kind: output, shape index: {}]
  %s6 = sld [smem:[#allocation0]]
  $region57: #{tpu_custom_call.1} parent=0
    _
  %s8 = ssub.s32 1, %s6
  %s9 = scalar_select 0, %s8, %s6
  $region1: #{tpu_custom_call.1} parent=0
    #allocation2 [shape = 'u8[32768]{0}', space=vmem, size = 0x8000, scoped, tag = 'input window, operand 0']
    #allocation3 [shape = 's32[2]{0}', space=sflag, size = 0x8, scoped, tag = 'scoped memory for tpu_custom_call.1']
    #allocation4 [shape = 's32[2]{0}', space=sflag, size = 0x8, scoped, tag = 'scoped memory for tpu_custom_call.1']
    #allocation5 [shape = 'u8[32768]{0}', space=vmem, size = 0x8000, scoped, tag = 'output window, operand 0']
    %10 = vsyncpa [#allocation3], 0
    %s11 = scalar_lea.sflag [#allocation3], 1
    %12 = vsyncpa %s11, 0
    %13 = vsyncpa [#allocation4], 0
    %s14 = scalar_lea.sflag [#allocation4], 1
    %15 = vsyncpa %s14, 0
    loop: start=0, step=1, limit=4
    $region2: #{tpu_custom_call.1} parent=1 // loop_pre_header
      _
    $region3: #{tpu_custom_call.1} parent=1 // loop_header
      %s17 = sphi 0, %s21
      %p18 = scmp.ge.s32.totalorder %s17, 4
      %s27 = sphi 0, %s29
      %s30 = sphi 0, %s27
      %s31 = sphi 0, %s30
      %s47 = sphi 0, %s31
      %s51 = sphi 0, %s51
      %s53 = sphi 0, %s51
      %s54 = sphi 0, %s53
      %s68 = sphi 0, %s54
      %s72 = sphi 0, %s72
      %s74 = sphi 0, %s72
      %s75 = sphi 0, %s74
      %s89 = sphi 0, %s75
      %s93 = sphi 0, %s93
      %s95 = sphi 0, %s93
      %s96 = sphi 0, %s95
      %s110 = sphi 0, %s96
      %s114 = sphi 0, %s114
      %s116 = sphi 0, %s114
      %s117 = sphi 0, %s116
      %s131 = sphi 0, %s117
      %s137 = sphi 0, %s139
      %s140 = sphi 0, %s137
      %s141 = sphi 0, %s140
      %s157 = sphi 0, %s141
    $region4: #{tpu_custom_call.1} parent=1 // loop_header_branch
      %20 = sbr.rel (%p18) target = $region8
    $region5: #{tpu_custom_call.1} parent=1 // loop_body
      %s22 = ssub.s32 %s17, 1
      %s23 = ssub.s32 %s17, 2
      %s24 = sadd.s32 %s17, 1
      %s25 = ssub.s32 %s17, %s24
      %p26 = scmp.eq.s32.totalorder %s25, 0
      %s28 = sadd.s32 %s27, 1
      %s29 = scalar_select %p26, %s27, %s28
      %p32 = pneg %p26
      %p33 = scmp.eq.s32.totalorder %s17, 1
      %p34 = por %p32, %p33
      %p35 = scmp.ne.s32.totalorder %s27, %s30
      %p36 = scmp.eq.s32.totalorder %s17, 0
      %p37 = por %p35, %p36
      %p38 = scmp.ne.s32.totalorder %s27, %s30
      %p39 = scmp.eq.s32.totalorder %s22, 1
      %p40 = por %p38, %p39
      %p41 = scmp.ne.s32.totalorder %s30, %s31
      %p42 = scmp.eq.s32.totalorder %s22, 0
      %p43 = por %p41, %p42
      %p44 = scmp.ne.s32.totalorder %s30, %s31
      %p45 = scmp.eq.s32.totalorder %s23, 1
      %p46 = por %p44, %p45
      %p48 = scmp.ne.s32.totalorder %s31, %s47
      %p49 = scmp.eq.s32.totalorder %s23, 0
      %p50 = por %p48, %p49
      %s52 = sadd.s32 %s51, 1
      %p55 = scmp.eq.s32.totalorder %s17, 1
      %p56 = scmp.ne.s32.totalorder %s51, %s53
      %p57 = scmp.eq.s32.totalorder %s17, 0
      %p58 = por %p56, %p57
      %p59 = scmp.ne.s32.totalorder %s51, %s53
      %p60 = scmp.eq.s32.totalorder %s22, 1
      %p61 = por %p59, %p60
      %p62 = scmp.ne.s32.totalorder %s53, %s54
      %p63 = scmp.eq.s32.totalorder %s22, 0
      %p64 = por %p62, %p63
      %p65 = scmp.ne.s32.totalorder %s53, %s54
      %p66 = scmp.eq.s32.totalorder %s23, 1
      %p67 = por %p65, %p66
      %p69 = scmp.ne.s32.totalorder %s54, %s68
      %p70 = scmp.eq.s32.totalorder %s23, 0
      %p71 = por %p69, %p70
      %s73 = sadd.s32 %s72, 1
      %p76 = scmp.eq.s32.totalorder %s17, 1
      %p77 = scmp.ne.s32.totalorder %s72, %s74
      %p78 = scmp.eq.s32.totalorder %s17, 0
      %p79 = por %p77, %p78
      %p80 = scmp.ne.s32.totalorder %s72, %s74
      %p81 = scmp.eq.s32.totalorder %s22, 1
      %p82 = por %p80, %p81
      %p83 = scmp.ne.s32.totalorder %s74, %s75
      %p84 = scmp.eq.s32.totalorder %s22, 0
      %p85 = por %p83, %p84
      %p86 = scmp.ne.s32.totalorder %s74, %s75
      %p87 = scmp.eq.s32.totalorder %s23, 1
      %p88 = por %p86, %p87
      %p90 = scmp.ne.s32.totalorder %s75, %s89
      %p91 = scmp.eq.s32.totalorder %s23, 0
      %p92 = por %p90, %p91
      %s94 = sadd.s32 %s93, 1
      %p97 = scmp.eq.s32.totalorder %s17, 1
      %p98 = scmp.ne.s32.totalorder %s93, %s95
      %p99 = scmp.eq.s32.totalorder %s17, 0
      %p100 = por %p98, %p99
      %p101 = scmp.ne.s32.totalorder %s93, %s95
      %p102 = scmp.eq.s32.totalorder %s22, 1
      %p103 = por %p101, %p102
      %p104 = scmp.ne.s32.totalorder %s95, %s96
      %p105 = scmp.eq.s32.totalorder %s22, 0
      %p106 = por %p104, %p105
      %p107 = scmp.ne.s32.totalorder %s95, %s96
      %p108 = scmp.eq.s32.totalorder %s23, 1
      %p109 = por %p107, %p108
      %p111 = scmp.ne.s32.totalorder %s96, %s110
      %p112 = scmp.eq.s32.totalorder %s23, 0
      %p113 = por %p111, %p112
      %s115 = sadd.s32 %s114, 1
      %p118 = scmp.eq.s32.totalorder %s17, 1
      %p119 = scmp.ne.s32.totalorder %s114, %s116
      %p120 = scmp.eq.s32.totalorder %s17, 0
      %p121 = por %p119, %p120
      %p122 = scmp.ne.s32.totalorder %s114, %s116
      %p123 = scmp.eq.s32.totalorder %s22, 1
      %p124 = por %p122, %p123
      %p125 = scmp.ne.s32.totalorder %s116, %s117
      %p126 = scmp.eq.s32.totalorder %s22, 0
      %p127 = por %p125, %p126
      %p128 = scmp.ne.s32.totalorder %s116, %s117
      %p129 = scmp.eq.s32.totalorder %s23, 1
      %p130 = por %p128, %p129
      %p132 = scmp.ne.s32.totalorder %s117, %s131
      %p133 = scmp.eq.s32.totalorder %s23, 0
      %p134 = por %p132, %p133
      %s135 = ssub.s32 %s17, %s24
      %p136 = scmp.eq.s32.totalorder %s135, 0
      %s138 = sadd.s32 %s137, 1
      %s139 = scalar_select %p136, %s137, %s138
      %p142 = pneg %p136
      %p143 = scmp.eq.s32.totalorder %s17, 1
      %p144 = por %p142, %p143
      %p145 = scmp.ne.s32.totalorder %s137, %s140
      %p146 = scmp.eq.s32.totalorder %s17, 0
      %p147 = por %p145, %p146
      %p148 = scmp.ne.s32.totalorder %s137, %s140
      %p149 = scmp.eq.s32.totalorder %s22, 1
      %p150 = por %p148, %p149
      %p151 = scmp.ne.s32.totalorder %s140, %s141
      %p152 = scmp.eq.s32.totalorder %s22, 0
      %p153 = por %p151, %p152
      %p154 = scmp.ne.s32.totalorder %s140, %s141
      %p155 = scmp.eq.s32.totalorder %s23, 1
      %p156 = por %p154, %p155
      %p158 = scmp.ne.s32.totalorder %s141, %s157
      %p159 = scmp.eq.s32.totalorder %s23, 0
      %p160 = por %p158, %p159
      %p161 = scmp.le.s32.totalorder 1, %s17
      %p162 = scmp.lt.s32.totalorder %s17, 3
      %p163 = pnand %p161, %p162
      %p164 = pneg %p163
      // Predicated region
      $region9: #{tpu_custom_call.1} parent=5 // pred_check
        _
      $region10: #{tpu_custom_call.1} parent=5 // pred_check_branch
        %166 = sbr.rel (%p163) target = $region12
      $region11: #{tpu_custom_call.1} parent=5 // pred_region
        %s167 = ssub.s32 %s17, 1
        // Predicated region
        $region13: #{tpu_custom_call.1} parent=11 // pred_check
          %p168 = pneg %p64
        $region14: #{tpu_custom_call.1} parent=11 // pred_check_branch
          %170 = sbr.rel (%p168) target = $region16
        $region15: #{tpu_custom_call.1} parent=11 // pred_region
          _
        $region16: #{tpu_custom_call.1} parent=11 // pred_fallthru
          _
        // Predicated region
        $region17: #{tpu_custom_call.1} parent=11 // pred_check
          %p171 = pneg %p85
        $region18: #{tpu_custom_call.1} parent=11 // pred_check_branch
          %173 = sbr.rel (%p171) target = $region20
        $region19: #{tpu_custom_call.1} parent=11 // pred_region
          _
        $region20: #{tpu_custom_call.1} parent=11 // pred_fallthru
          _
        // Predicated region
        $region21: #{tpu_custom_call.1} parent=11 // pred_check
          %p174 = pneg %p106
        $region22: #{tpu_custom_call.1} parent=11 // pred_check_branch
          %176 = sbr.rel (%p174) target = $region24
        $region23: #{tpu_custom_call.1} parent=11 // pred_region
          _
        $region24: #{tpu_custom_call.1} parent=11 // pred_fallthru
          _
        // Predicated region
        $region25: #{tpu_custom_call.1} parent=11 // pred_check
          %p177 = pneg %p127
        $region26: #{tpu_custom_call.1} parent=11 // pred_check_branch
          %179 = sbr.rel (%p177) target = $region28
        $region27: #{tpu_custom_call.1} parent=11 // pred_region
          _
        $region28: #{tpu_custom_call.1} parent=11 // pred_fallthru
          _
      $region12: #{tpu_custom_call.1} parent=5 // pred_fallthru
        _
      %p180 = scmp.lt.s32.totalorder %s17, 2
      // Predicated region
      $region29: #{tpu_custom_call.1} parent=5 // pred_check
        %p181 = pneg %p180
      $region30: #{tpu_custom_call.1} parent=5 // pred_check_branch
        %183 = sbr.rel (%p181) target = $region32
      $region31: #{tpu_custom_call.1} parent=5 // pred_region
        // Predicated region
        $region33: #{tpu_custom_call.1} parent=31 // pred_check
          %p184 = pneg %p37
        $region34: #{tpu_custom_call.1} parent=31 // pred_check_branch
          %186 = sbr.rel (%p184) target = $region36
        $region35: #{tpu_custom_call.1} parent=31 // pred_region
          %s187 = sand.u32 %s27, 1
          %s188 = scalar_lea.sflag [#allocation3], %s187
          %s189 = sand.u32 %s27, 1
          %s190 = smul.addr %s189, 32
          %s191 = scalar_lea.vmem [#allocation2], %s190
          %s193 = ssub.s32 512, 512
          %194 = vsyncadd %s188, %s193
          %s195 = smul.addr %s17, 4
          %s196 = smul.addr %s195, 128
          %s197 = scalar_lea.hbm %s0, %s196
          %s198 = sshll.u32 %s191, 4
          %s199 = int_to_ptr.vmem [resolvable:$true] %s198
          %204 = dma.hbm_to_vmem [thread:$0]  %s197, 512, %s199, %s188, 128, 128, 8
        $region36: #{tpu_custom_call.1} parent=31 // pred_fallthru
          _
      $region32: #{tpu_custom_call.1} parent=5 // pred_fallthru
        _
      %p205 = scmp.le.s32.totalorder 1, %s17
      %p206 = scmp.lt.s32.totalorder %s17, 3
      %p207 = pnand %p205, %p206
      %p208 = pneg %p207
      // Predicated region
      $region37: #{tpu_custom_call.1} parent=5 // pred_check
        _
      $region38: #{tpu_custom_call.1} parent=5 // pred_check_branch
        %210 = sbr.rel (%p207) target = $region40
      $region39: #{tpu_custom_call.1} parent=5 // pred_region
        %s211 = ssub.s32 %s17, 1
        %s212 = sand.u32 %s30, 1
        %s213 = scalar_lea.sflag [#allocation3], %s212
        %s214 = sand.u32 %s30, 1
        %s215 = smul.addr %s214, 32
        %s216 = scalar_lea.vmem [#allocation2], %s215
        // Predicated region
        $region41: #{tpu_custom_call.1} parent=39 // pred_check
          %p217 = pneg %p43
        $region42: #{tpu_custom_call.1} parent=39 // pred_check_branch
          %219 = sbr.rel (%p217) target = $region44
        $region43: #{tpu_custom_call.1} parent=39 // pred_region
          %220 = dma.done %s213, 512
        $region44: #{tpu_custom_call.1} parent=39 // pred_fallthru
          _
        %s221 = sand.u32 %s30, 1
        %s222 = scalar_lea.sflag [#allocation3], %s221
        %s223 = sand.u32 %s30, 1
        %s224 = smul.addr %s223, 32
        %s225 = scalar_lea.vmem [#allocation2], %s224
        %p226 = pneg %p43
        %p227 = pneg %p40
        %p228 = pneg %p64
        %p229 = pneg %p61
        %p230 = pneg %p85
        %p231 = pneg %p82
        %p232 = pneg %p106
        %p233 = pneg %p103
        %p234 = pneg %p127
        %p235 = pneg %p124
        %p236 = pneg %p153
        %p237 = pneg %p150
        %s238 = sand.u32 %s140, 1
        %s239 = scalar_lea.sflag [#allocation4], %s238
        %s240 = sand.u32 %s140, 1
        %s241 = smul.addr %s240, 32
        %s242 = scalar_lea.vmem [#allocation5], %s241
        %v243 = vld [vmem:[%s216] sm:$0xff]
        %v244 = vld [vmem:[%s216 + $0x8] sm:$0xff]
        %v245 = vld [vmem:[%s216 + $0x10] sm:$0xff]
        %v246 = vld [vmem:[%s216 + $0x18] sm:$0xff]
        %vm247 = vcmask 523264
        %v248 = vsel %vm247, %v243, 0.0
        %249 = vadd.xlane.f32.xlu0 %v248
        %v250 = vpop.xlane.xlu0 %249
        %v251 = vsel %vm247, %v244, 0.0
        %252 = vadd.xlane.f32.xlu0 %v251
        %v253 = vpop.xlane.xlu0 %252
        %v254 = vsel %vm247, %v245, 0.0
        %255 = vadd.xlane.f32.xlu0 %v254
        %v256 = vpop.xlane.xlu0 %255
        %v257 = vsel %vm247, %v246, 0.0
        %258 = vadd.xlane.f32.xlu0 %v257
        %v259 = vpop.xlane.xlu0 %258
        %v260 = vmul.f32 %v250, 0.015625
        %v261 = vmul.f32 %v253, 0.015625
        %v262 = vmul.f32 %v256, 0.015625
        %v263 = vmul.f32 %v259, 0.015625
        %v264 = vsel %vm247, %v243, -inf
        %265 = vmax.xlane.f32.xlu0 %v264
        %v266 = vpop.xlane.xlu0 %265
        %v267 = vsel %vm247, %v244, -inf
        %268 = vmax.xlane.f32.xlu0 %v267
        %v269 = vpop.xlane.xlu0 %268
        %v270 = vsel %vm247, %v245, -inf
        %271 = vmax.xlane.f32.xlu0 %v270
        %v272 = vpop.xlane.xlu0 %271
        %v273 = vsel %vm247, %v246, -inf
        %274 = vmax.xlane.f32.xlu0 %v273
        %v275 = vpop.xlane.xlu0 %274
        %v276 = vld [vmem:[%s1] sm:$0xff]
        %v277 = vld [vmem:[%s1 + $0x8] sm:$0xff]
        %v278 = vld [vmem:[%s1 + $0x10] sm:$0xff]
        %v279 = vld [vmem:[%s1 + $0x18] sm:$0xff]
        %v280 = vld [vmem:[%s2] sm:$0x1]
        %v281 = vld [vmem:[%s3] sm:$0x3]
        %v282 = vld [vmem:[%s4] sm:$0x1]
        %v287 = vlaneseq
        %v288 = vand.u32 %v287, 127
        %v289 = vlaneseq
        %v290 = vshrl.u32 %v289, 7
        %v291 = vsub.s32 %v288, %v290
        %v292 = vrot.slane %v260, %v291
        %v293 = vadd.s32 %v288, 4294967288
        %v294 = vlaneseq
        %v295 = vshrl.u32 %v294, 7
        %v296 = vsub.s32 %v293, %v295
        %v297 = vrot.slane %v261, %v296
        %vm298 = vcmask 130112
        %v299 = vsel %vm298, %v297, %v292
        %v300 = vadd.s32 %v288, 4294967280
        %v301 = vlaneseq
        %v302 = vshrl.u32 %v301, 7
        %v303 = vsub.s32 %v300, %v302
        %v304 = vrot.slane %v262, %v303
        %vm305 = vcmask 195712
        %v306 = vsel %vm305, %v304, %v299
        %v307 = vadd.s32 %v288, 4294967272
        %v308 = vlaneseq
        %v309 = vshrl.u32 %v308, 7
        %v310 = vsub.s32 %v307, %v309
        %v311 = vrot.slane %v263, %v310
        %vm312 = vcmask 261312
        %v313 = vsel %vm312, %v311, %v306
        %vm314 = vcmask 261120
        %v315 = vsel %vm314, %v313, 0
        %317 = vmatprep.subr.mxu0 0.0
        %318 = vmatpush1.msra.mxu0 %v276
        %319 = vmatprep.subr.mxu0 0.0
        %320 = vmatpush1.msra.mxu0 %v277
        %321 = vmatprep.subr.mxu0 0.0
        %322 = vmatpush1.msra.mxu0 %v278
        %323 = vmatprep.subr.mxu0 0.0
        %324 = vmatpush1.msra.mxu0 %v279
        %325 = vmatprep.subr.mxu0 0.0
        %326 = vmatpush1.msra.mxu0 0.0
        %327 = vmatprep.subr.mxu0 0.0
        %328 = vmatpush1.msra.mxu0 0.0
        %329 = vmatprep.subr.mxu0 0.0
        %330 = vmatpush1.msra.mxu0 0.0
        %331 = vmatprep.subr.mxu0 0.0
        %332 = vmatpush1.msra.mxu0 0.0
        %333 = vmatprep.subr.mxu0 0.0
        %334 = vmatpush1.msra.mxu0 0.0
        %335 = vmatprep.subr.mxu0 0.0
        %336 = vmatpush1.msra.mxu0 0.0
        %337 = vmatprep.subr.mxu0 0.0
        %338 = vmatpush1.msra.mxu0 0.0
        %339 = vmatprep.subr.mxu0 0.0
        %340 = vmatpush1.msra.mxu0 0.0
        %341 = vmatprep.subr.mxu0 0.0
        %342 = vmatpush1.msra.mxu0 0.0
        %343 = vmatprep.subr.mxu0 0.0
        %344 = vmatpush1.msra.mxu0 0.0
        %345 = vmatprep.subr.mxu0 0.0
        %346 = vmatpush1.msra.mxu0 0.0
        %347 = vmatprep.subr.mxu0 0.0
        %348 = vmatpush1.msra.mxu0 0.0
        %349 = vmatprep.subr.mxu0 0.0
        %350 = vmatpush1.msra.mxu0 0.0
        %351 = vmatprep.subr.mxu0 0.0
        %352 = vmatpush1.msra.mxu0 0.0
        %353 = vmatprep.subr.mxu0 0.0
        %354 = vmatpush1.msra.mxu0 0.0
        %355 = vmatprep.subr.mxu0 0.0
        %356 = vmatpush1.msra.mxu0 0.0
        %357 = vmatprep.subr.mxu0 0.0
        %358 = vmatpush1.msra.mxu0 0.0
        %359 = vmatprep.subr.mxu0 0.0
        %360 = vmatpush1.msra.mxu0 0.0
        %361 = vmatprep.subr.mxu0 0.0
        %362 = vmatpush1.msra.mxu0 0.0
        %363 = vmatprep.subr.mxu0 0.0
        %364 = vmatpush1.msra.mxu0 0.0
        %365 = vmatprep.subr.mxu0 0.0
        %366 = vmatpush1.msra.mxu0 0.0
        %367 = vmatprep.subr.mxu0 0.0
        %368 = vmatpush1.msra.mxu0 0.0
        %369 = vmatprep.subr.mxu0 0.0
        %370 = vmatpush1.msra.mxu0 0.0
        %371 = vmatprep.subr.mxu0 0.0
        %372 = vmatpush1.msra.mxu0 0.0
        %373 = vmatprep.subr.mxu0 0.0
        %374 = vmatpush1.msra.mxu0 0.0
        %375 = vmatprep.subr.mxu0 0.0
        %376 = vmatpush1.msra.mxu0 0.0
        %377 = vmatprep.subr.mxu0 0.0
        %378 = vmatpush1.msra.mxu0 0.0
        %379 = vmatprep.subr.mxu0 0.0
        %380 = vmatpush1.msra.mxu0 0.0
        %381 = vmatprep.mubr.f32.mxu0 0.0
        %382 = vmatmul.mubr.f32.gmra.mrb[0].mxu0 %v315
        %v383 = vpop.f32.mrb[0].mxu0
        %v384 = vadd.f32 %v280, %v383
        %v385 = vpop.f32.mrb[0].mxu0
        %386 = vdwg.mxu0
        %v387 = vmax.f32 %v384, 0.0
        %vm388 = vcmask 15360
        %v390 = vsel %vm388, %v387, 0
        %vm392 = vcmask 1041408
        %v394 = vsel %vm392, %v281, 0
        %396 = vmatprep.subr.mxu0 0.0
        %397 = vmatpush1.msra.mxu0 %v394
        %398 = vmatprep.subr.mxu0 0.0
        %399 = vmatpush1.msra.mxu0 0.0
        %400 = vmatprep.subr.mxu0 0.0
        %401 = vmatpush1.msra.mxu0 0.0
        %402 = vmatprep.subr.mxu0 0.0
        %403 = vmatpush1.msra.mxu0 0.0
        %404 = vmatprep.subr.mxu0 0.0
        %405 = vmatpush1.msra.mxu0 0.0
        %406 = vmatprep.subr.mxu0 0.0
        %407 = vmatpush1.msra.mxu0 0.0
        %408 = vmatprep.subr.mxu0 0.0
        %409 = vmatpush1.msra.mxu0 0.0
        %410 = vmatprep.subr.mxu0 0.0
        %411 = vmatpush1.msra.mxu0 0.0
        %412 = vmatprep.subr.mxu0 0.0
        %413 = vmatpush1.msra.mxu0 0.0
        %414 = vmatprep.subr.mxu0 0.0
        %415 = vmatpush1.msra.mxu0 0.0
        %416 = vmatprep.subr.mxu0 0.0
        %417 = vmatpush1.msra.mxu0 0.0
        %418 = vmatprep.subr.mxu0 0.0
        %419 = vmatpush1.msra.mxu0 0.0
        %420 = vmatprep.subr.mxu0 0.0
        %421 = vmatpush1.msra.mxu0 0.0
        %422 = vmatprep.subr.mxu0 0.0
        %423 = vmatpush1.msra.mxu0 0.0
        %424 = vmatprep.subr.mxu0 0.0
        %425 = vmatpush1.msra.mxu0 0.0
        %426 = vmatprep.subr.mxu0 0.0
        %427 = vmatpush1.msra.mxu0 0.0
        %428 = vmatprep.subr.mxu0 0.0
        %429 = vmatpush1.msra.mxu0 0.0
        %430 = vmatprep.subr.mxu0 0.0
        %431 = vmatpush1.msra.mxu0 0.0
        %432 = vmatprep.subr.mxu0 0.0
        %433 = vmatpush1.msra.mxu0 0.0
        %434 = vmatprep.subr.mxu0 0.0
        %435 = vmatpush1.msra.mxu0 0.0
        %436 = vmatprep.subr.mxu0 0.0
        %437 = vmatpush1.msra.mxu0 0.0
        %438 = vmatprep.subr.mxu0 0.0
        %439 = vmatpush1.msra.mxu0 0.0
        %440 = vmatprep.subr.mxu0 0.0
        %441 = vmatpush1.msra.mxu0 0.0
        %442 = vmatprep.subr.mxu0 0.0
        %443 = vmatpush1.msra.mxu0 0.0
        %444 = vmatprep.subr.mxu0 0.0
        %445 = vmatpush1.msra.mxu0 0.0
        %446 = vmatprep.subr.mxu0 0.0
        %447 = vmatpush1.msra.mxu0 0.0
        %448 = vmatprep.subr.mxu0 0.0
        %449 = vmatpush1.msra.mxu0 0.0
        %450 = vmatprep.subr.mxu0 0.0
        %451 = vmatpush1.msra.mxu0 0.0
        %452 = vmatprep.subr.mxu0 0.0
        %453 = vmatpush1.msra.mxu0 0.0
        %454 = vmatprep.subr.mxu0 0.0
        %455 = vmatpush1.msra.mxu0 0.0
        %456 = vmatprep.subr.mxu0 0.0
        %457 = vmatpush1.msra.mxu0 0.0
        %458 = vmatprep.subr.mxu0 0.0
        %459 = vmatpush1.msra.mxu0 0.0
        %460 = vmatprep.mubr.f32.mxu0 0.0
        %461 = vmatmul.mubr.f32.gmra.mrb[0].mxu0 %v390
        %v462 = vpop.f32.mrb[0].mxu0
        %v463 = vadd.f32 %v282, %v462
        %v464 = vpop.f32.mrb[0].mxu0
        %465 = vdwg.mxu0
        %v470 = vlaneseq
        %v471 = vshrl.u32 %v470, 7
        %v472 = vsub.s32 %v288, %v471
        %v473 = vrot.slane %v266, %v472
        %v474 = vlaneseq
        %v475 = vshrl.u32 %v474, 7
        %v476 = vsub.s32 %v293, %v475
        %v477 = vrot.slane %v269, %v476
        %v478 = vsel %vm298, %v477, %v473
        %v479 = vlaneseq
        %v480 = vshrl.u32 %v479, 7
        %v481 = vsub.s32 %v300, %v480
        %v482 = vrot.slane %v272, %v481
        %v483 = vsel %vm305, %v482, %v478
        %v484 = vlaneseq
        %v485 = vshrl.u32 %v484, 7
        %v486 = vsub.s32 %v307, %v485
        %v487 = vrot.slane %v275, %v486
        %v488 = vsel %vm312, %v487, %v483
        %v489 = vsel %vm314, %v488, 0
        %491 = vmatprep.subr.mxu0 0.0
        %492 = vmatpush1.msra.mxu0 %v276
        %493 = vmatprep.subr.mxu0 0.0
        %494 = vmatpush1.msra.mxu0 %v277
        %495 = vmatprep.subr.mxu0 0.0
        %496 = vmatpush1.msra.mxu0 %v278
        %497 = vmatprep.subr.mxu0 0.0
        %498 = vmatpush1.msra.mxu0 %v279
        %499 = vmatprep.subr.mxu0 0.0
        %500 = vmatpush1.msra.mxu0 0.0
        %501 = vmatprep.subr.mxu0 0.0
        %502 = vmatpush1.msra.mxu0 0.0
        %503 = vmatprep.subr.mxu0 0.0
        %504 = vmatpush1.msra.mxu0 0.0
        %505 = vmatprep.subr.mxu0 0.0
        %506 = vmatpush1.msra.mxu0 0.0
        %507 = vmatprep.subr.mxu0 0.0
        %508 = vmatpush1.msra.mxu0 0.0
        %509 = vmatprep.subr.mxu0 0.0
        %510 = vmatpush1.msra.mxu0 0.0
        %511 = vmatprep.subr.mxu0 0.0
        %512 = vmatpush1.msra.mxu0 0.0
        %513 = vmatprep.subr.mxu0 0.0
        %514 = vmatpush1.msra.mxu0 0.0
        %515 = vmatprep.subr.mxu0 0.0
        %516 = vmatpush1.msra.mxu0 0.0
        %517 = vmatprep.subr.mxu0 0.0
        %518 = vmatpush1.msra.mxu0 0.0
        %519 = vmatprep.subr.mxu0 0.0
        %520 = vmatpush1.msra.mxu0 0.0
        %521 = vmatprep.subr.mxu0 0.0
        %522 = vmatpush1.msra.mxu0 0.0
        %523 = vmatprep.subr.mxu0 0.0
        %524 = vmatpush1.msra.mxu0 0.0
        %525 = vmatprep.subr.mxu0 0.0
        %526 = vmatpush1.msra.mxu0 0.0
        %527 = vmatprep.subr.mxu0 0.0
        %528 = vmatpush1.msra.mxu0 0.0
        %529 = vmatprep.subr.mxu0 0.0
        %530 = vmatpush1.msra.mxu0 0.0
        %531 = vmatprep.subr.mxu0 0.0
        %532 = vmatpush1.msra.mxu0 0.0
        %533 = vmatprep.subr.mxu0 0.0
        %534 = vmatpush1.msra.mxu0 0.0
        %535 = vmatprep.subr.mxu0 0.0
        %536 = vmatpush1.msra.mxu0 0.0
        %537 = vmatprep.subr.mxu0 0.0
        %538 = vmatpush1.msra.mxu0 0.0
        %539 = vmatprep.subr.mxu0 0.0
        %540 = vmatpush1.msra.mxu0 0.0
        %541 = vmatprep.subr.mxu0 0.0
        %542 = vmatpush1.msra.mxu0 0.0
        %543 = vmatprep.subr.mxu0 0.0
        %544 = vmatpush1.msra.mxu0 0.0
        %545 = vmatprep.subr.mxu0 0.0
        %546 = vmatpush1.msra.mxu0 0.0
        %547 = vmatprep.subr.mxu0 0.0
        %548 = vmatpush1.msra.mxu0 0.0
        %549 = vmatprep.subr.mxu0 0.0
        %550 = vmatpush1.msra.mxu0 0.0
        %551 = vmatprep.subr.mxu0 0.0
        %552 = vmatpush1.msra.mxu0 0.0
        %553 = vmatprep.subr.mxu0 0.0
        %554 = vmatpush1.msra.mxu0 0.0
        %555 = vmatprep.mubr.f32.mxu0 0.0
        %556 = vmatmul.mubr.f32.gmra.mrb[0].mxu0 %v489
        %v557 = vpop.f32.mrb[0].mxu0
        %v558 = vadd.f32 %v280, %v557
        %v559 = vpop.f32.mrb[0].mxu0
        %560 = vdwg.mxu0
        %v561 = vmax.f32 %v558, 0.0
        %v563 = vsel %vm388, %v561, 0
        %565 = vmatprep.subr.mxu0 0.0
        %566 = vmatpush1.msra.mxu0 %v394
        %567 = vmatprep.subr.mxu0 0.0
        %568 = vmatpush1.msra.mxu0 0.0
        %569 = vmatprep.subr.mxu0 0.0
        %570 = vmatpush1.msra.mxu0 0.0
        %571 = vmatprep.subr.mxu0 0.0
        %572 = vmatpush1.msra.mxu0 0.0
        %573 = vmatprep.subr.mxu0 0.0
        %574 = vmatpush1.msra.mxu0 0.0
        %575 = vmatprep.subr.mxu0 0.0
        %576 = vmatpush1.msra.mxu0 0.0
        %577 = vmatprep.subr.mxu0 0.0
        %578 = vmatpush1.msra.mxu0 0.0
        %579 = vmatprep.subr.mxu0 0.0
        %580 = vmatpush1.msra.mxu0 0.0
        %581 = vmatprep.subr.mxu0 0.0
        %582 = vmatpush1.msra.mxu0 0.0
        %583 = vmatprep.subr.mxu0 0.0
        %584 = vmatpush1.msra.mxu0 0.0
        %585 = vmatprep.subr.mxu0 0.0
        %586 = vmatpush1.msra.mxu0 0.0
        %587 = vmatprep.subr.mxu0 0.0
        %588 = vmatpush1.msra.mxu0 0.0
        %589 = vmatprep.subr.mxu0 0.0
        %590 = vmatpush1.msra.mxu0 0.0
        %591 = vmatprep.subr.mxu0 0.0
        %592 = vmatpush1.msra.mxu0 0.0
        %593 = vmatprep.subr.mxu0 0.0
        %594 = vmatpush1.msra.mxu0 0.0
        %595 = vmatprep.subr.mxu0 0.0
        %596 = vmatpush1.msra.mxu0 0.0
        %597 = vmatprep.subr.mxu0 0.0
        %598 = vmatpush1.msra.mxu0 0.0
        %599 = vmatprep.subr.mxu0 0.0
        %600 = vmatpush1.msra.mxu0 0.0
        %601 = vmatprep.subr.mxu0 0.0
        %602 = vmatpush1.msra.mxu0 0.0
        %603 = vmatprep.subr.mxu0 0.0
        %604 = vmatpush1.msra.mxu0 0.0
        %605 = vmatprep.subr.mxu0 0.0
        %606 = vmatpush1.msra.mxu0 0.0
        %607 = vmatprep.subr.mxu0 0.0
        %608 = vmatpush1.msra.mxu0 0.0
        %609 = vmatprep.subr.mxu0 0.0
        %610 = vmatpush1.msra.mxu0 0.0
        %611 = vmatprep.subr.mxu0 0.0
        %612 = vmatpush1.msra.mxu0 0.0
        %613 = vmatprep.subr.mxu0 0.0
        %614 = vmatpush1.msra.mxu0 0.0
        %615 = vmatprep.subr.mxu0 0.0
        %616 = vmatpush1.msra.mxu0 0.0
        %617 = vmatprep.subr.mxu0 0.0
        %618 = vmatpush1.msra.mxu0 0.0
        %619 = vmatprep.subr.mxu0 0.0
        %620 = vmatpush1.msra.mxu0 0.0
        %621 = vmatprep.subr.mxu0 0.0
        %622 = vmatpush1.msra.mxu0 0.0
        %623 = vmatprep.subr.mxu0 0.0
        %624 = vmatpush1.msra.mxu0 0.0
        %625 = vmatprep.subr.mxu0 0.0
        %626 = vmatpush1.msra.mxu0 0.0
        %627 = vmatprep.subr.mxu0 0.0
        %628 = vmatpush1.msra.mxu0 0.0
        %629 = vmatprep.mubr.f32.mxu0 0.0
        %630 = vmatmul.mubr.f32.gmra.mrb[0].mxu0 %v563
        %v631 = vpop.f32.mrb[0].mxu0
        %v632 = vadd.f32 %v282, %v631
        %v633 = vpop.f32.mrb[0].mxu0
        %634 = vdwg.mxu0
        %v635 = vadd.f32 %v463, %v632
        %v636 = vxor.u32 %v635, 2147483648
        %v637 = vmul.f32 %v636, 1.442695
        %v638 = vpow.pop %v637
        %v639 = vadd.f32 %v638, 1.0
        %v640 = vrcp.pop %v639
        %v641 = vmul.f32 1.0, %v640
        %v642 = vlaneseq
        %v643 = vshrl.u32 %v642, 7
        %v644 = vsub.s32 0, %v643
        %v645 = vrot.slane %v641, %v644
        %647 = vbcast.lane.b32.xlu0 %v645, 256
        %v648 = vpop.permute.xlu0 %647
        %s650 = sor.u32 256, 8
        %651 = vbcast.lane.b32.xlu0 %v645, %s650
        %v652 = vpop.permute.xlu0 %651
        %s654 = sor.u32 256, 16
        %655 = vbcast.lane.b32.xlu0 %v645, %s654
        %v656 = vpop.permute.xlu0 %655
        %s658 = sor.u32 256, 24
        %659 = vbcast.lane.b32.xlu0 %v645, %s658
        %v660 = vpop.permute.xlu0 %659
        %v661 = vmul.f32 %v243, %v648
        %v662 = vmul.f32 %v244, %v652
        %v663 = vmul.f32 %v245, %v656
        %v664 = vmul.f32 %v246, %v660
        %665 = vst.msk [vmem:[%s242] sm:$0xff] %vm247, %v661
        %666 = vst.msk [vmem:[%s242 + $0x8] sm:$0xff] %vm247, %v662
        %667 = vst.msk [vmem:[%s242 + $0x10] sm:$0xff] %vm247, %v663
        %668 = vst.msk [vmem:[%s242 + $0x18] sm:$0xff] %vm247, %v664
        %s669 = sand.u32 %s140, 1
        %s670 = scalar_lea.sflag [#allocation4], %s669
        %s671 = sand.u32 %s140, 1
        %s672 = smul.addr %s671, 32
        %s673 = scalar_lea.vmem [#allocation5], %s672
        // Predicated region
        $region45: #{tpu_custom_call.1} parent=39 // pred_check
          %p674 = pneg %p150
        $region46: #{tpu_custom_call.1} parent=39 // pred_check_branch
          %676 = sbr.rel (%p674) target = $region48
        $region47: #{tpu_custom_call.1} parent=39 // pred_region
          %s678 = ssub.s32 512, 512
          %679 = vsyncadd %s670, %s678
          %s680 = smul.addr %s22, 4
          %s681 = smul.addr %s680, 128
          %s682 = scalar_lea.hbm %s5, %s681
          %s683 = sshll.u32 %s673, 4
          %s684 = int_to_ptr.vmem [resolvable:$true] %s683
          %689 = dma.vmem_to_hbm [thread:$0]  %s684, 512, %s682, %s670, 128, 128, 8
        $region48: #{tpu_custom_call.1} parent=39 // pred_fallthru
          _
      $region40: #{tpu_custom_call.1} parent=5 // pred_fallthru
        _
      %p690 = scmp.le.s32.totalorder 2, %s17
      // Predicated region
      $region49: #{tpu_custom_call.1} parent=5 // pred_check
        %p691 = pneg %p690
      $region50: #{tpu_custom_call.1} parent=5 // pred_check_branch
        %693 = sbr.rel (%p691) target = $region52
      $region51: #{tpu_custom_call.1} parent=5 // pred_region
        %s694 = ssub.s32 %s17, 2
        // Predicated region
        $region53: #{tpu_custom_call.1} parent=51 // pred_check
          %p695 = pneg %p156
        $region54: #{tpu_custom_call.1} parent=51 // pred_check_branch
          %697 = sbr.rel (%p695) target = $region56
        $region55: #{tpu_custom_call.1} parent=51 // pred_region
          %s698 = sand.u32 %s141, 1
          %s699 = scalar_lea.sflag [#allocation4], %s698
          %s700 = sand.u32 %s141, 1
          %s701 = smul.addr %s700, 32
          %s702 = scalar_lea.vmem [#allocation5], %s701
          %703 = dma.done %s699, 512
        $region56: #{tpu_custom_call.1} parent=51 // pred_fallthru
          _
      $region52: #{tpu_custom_call.1} parent=5 // pred_fallthru
        _
    $region6: #{tpu_custom_call.1} parent=1 // loop_footer
      %s21 = sadd.s32 1, %s17
    $region7: #{tpu_custom_call.1} parent=1 // loop_footer_branch
      %16 = sbr.rel target = $region3
    $region8: #{tpu_custom_call.1} parent=1 // loop_exit
      _
    %704 = vsyncpa [#allocation3], 1
    %s705 = scalar_lea.sflag [#allocation3], 1
    %706 = vsyncpa %s705, 1
    %707 = vsyncpa [#allocation4], 1
    %s708 = scalar_lea.sflag [#allocation4], 1
    %709 = vsyncpa %s708, 1

</llo_original>
